<compile_context>
chip_gen: v5e
topology: v5e:2x2
jax: 0.10.0
libtpu: 0.0.40
codegen_flags: <defaults>
</compile_context>

<pallas_src>
import functools

import jax
import jax.numpy as jnp
from jax import lax
from jax.experimental import pallas as pl
from jax.experimental.pallas import tpu as pltpu


def _round_up(x, m):
    return ((x + m - 1) // m) * m


# ----------------------- kernel A: fused QKV projection ---------------------

def _qkv_proj_kernel(x_ref, w_ref, b_ref, q_ref, k_ref, v_ref, *, dk, c):
    # (TM, C) @ (C, 2*DK + C) in bf16, f32 accumulation, single bias add,
    # then lane-aligned slices are written to the three bf16 outputs.
    acc = jnp.dot(x_ref[...], w_ref[...], preferred_element_type=jnp.float32)
    acc = acc + b_ref[...]
    q_ref[...] = acc[:, :dk].astype(q_ref.dtype)
    k_ref[...] = acc[:, dk:2 * dk].astype(k_ref.dtype)
    v_ref[...] = acc[:, 2 * dk:2 * dk + c].astype(v_ref.dtype)


def qkv_projection(x2d, w_fused, b_fused, dk, c, tm):
    m, kdim = x2d.shape
    dqkv = w_fused.shape[1]
    return pl.pallas_call(
        functools.partial(_qkv_proj_kernel, dk=dk, c=c),
        out_shape=(
            jax.ShapeDtypeStruct((m, dk), jnp.bfloat16),   # q (lane-padded)
            jax.ShapeDtypeStruct((m, dk), jnp.bfloat16),   # k (lane-padded)
            jax.ShapeDtypeStruct((m, c), jnp.bfloat16),    # v
        ),
        grid=(m // tm,),
        in_specs=[
            pl.BlockSpec((tm, kdim), lambda i: (i, 0)),
            pl.BlockSpec((kdim, dqkv), lambda i: (0, 0)),
            pl.BlockSpec((1, dqkv), lambda i: (0, 0)),
        ],
        out_specs=(
            pl.BlockSpec((tm, dk), lambda i: (i, 0)),
            pl.BlockSpec((tm, dk), lambda i: (i, 0)),
            pl.BlockSpec((tm, c), lambda i: (i, 0)),
        ),
        compiler_params=pltpu.CompilerParams(
            dimension_semantics=("parallel",),
            vmem_limit_bytes=32 * 1024 * 1024,
        ),
    )(x2d, w_fused, b_fused)


# --------------------------- kernel B: attention ----------------------------

def _attn_kernel(q_ref, k_ref, v_ref, x_ref, g_ref, o_ref, a_ref):
    # One (batch, q-tile) per grid step.
    q = q_ref[0]                                  # (TQ, DK) bf16
    k = k_ref[0]                                  # (N,  DK) bf16
    v = v_ref[0]                                  # (N,  C)  bf16

    # energy[i, j] = q_i . k_j  -- contract the feature axis directly
    # (no explicit k transpose / XLU vxpose).
    e = lax.dot_general(q, k, (((1,), (1,)), ((), ())),
                        preferred_element_type=jnp.float32)   # (TQ, N) f32

    # softmax over keys (dim=-1); max-subtraction is a safe stabilization.
    e = e - jnp.max(e, axis=-1, keepdims=True)
    p = jnp.exp(e)
    p = p * pl.reciprocal(jnp.sum(p, axis=-1, keepdims=True), approx=True)
    a_ref[0] = p                                  # returned attention map

    out = jnp.dot(p.astype(jnp.bfloat16), v,
                  preferred_element_type=jnp.float32)          # (TQ, C) f32
    o_ref[0] = g_ref[0, 0] * out + x_ref[0]       # gamma * out + x (f32)


# -------------------------------- wrapper -----------------------------------

def self_attn(x_nchw, params):
    """PyTorch Self_Attn.forward.  x_nchw: (B, C, W, H).  Returns (out, attn)."""
    B, C, W, H = x_nchw.shape
    N = W * H
    C8 = params["wq"].shape[0]
    DK = _round_up(C8, 128)                 # lane-pad q/k feature dim
    TQ = 128 if N % 128 == 0 else N         # q-row tile (full-N fallback)

    # NCHW -> (B, N, C); position index p = w*H + h matches torch's
    # .view(B, C, W*H) flattening, so the returned attention map matches.
    x_flat = jnp.transpose(x_nchw, (0, 2, 3, 1)).reshape(B, N, C)
    x_flat = x_flat.astype(jnp.float32)

    # Fused QKV weight: 1x1 conv y = x @ w.T + b; concat [q|k|v] along the
    # output axis with q/k zero-padded to DK so each slab is lane-aligned.
    wq = jnp.transpose(params["wq"].reshape(C8, C))          # (C, C8)
    wk = jnp.transpose(params["wk"].reshape(C8, C))          # (C, C8)
    wv = jnp.transpose(params["wv"].reshape(C, C))           # (C, C)
    pad_cols = ((0, 0), (0, DK - C8))
    w_fused = jnp.concatenate(
        [jnp.pad(wq, pad_cols), jnp.pad(wk, pad_cols), wv],
        axis=1).astype(jnp.bfloat16)                         # (C, 2*DK + C)
    b_fused = jnp.concatenate(
        [jnp.pad(params["bq"], (0, DK - C8)),
         jnp.pad(params["bk"], (0, DK - C8)),
         params["bv"]]).reshape(1, 2 * DK + C).astype(jnp.float32)

    # Kernel A: fused QKV projection (bf16 MXU, f32 accumulate).
    x2d = x_flat.reshape(B * N, C).astype(jnp.bfloat16)
    q, k, v = qkv_projection(x2d, w_fused, b_fused, DK, C, TQ)
    q = q.reshape(B, N, DK)
    k = k.reshape(B, N, DK)
    v = v.reshape(B, N, C)

    gamma = params["gamma"].reshape(1, 1).astype(jnp.float32)

    # Kernel B: attention, tiled over (batch, q rows).
    out, attn = pl.pallas_call(
        _attn_kernel,
        out_shape=(
            jax.ShapeDtypeStruct((B, N, C), jnp.float32),
            jax.ShapeDtypeStruct((B, N, N), jnp.float32),
        ),
        grid=(B, N // TQ),
        in_specs=[
            pl.BlockSpec((1, TQ, DK), lambda b, i: (b, i, 0)),   # q tile
            pl.BlockSpec((1, N, DK), lambda b, i: (b, 0, 0)),    # full k
            pl.BlockSpec((1, N, C), lambda b, i: (b, 0, 0)),     # full v
            pl.BlockSpec((1, TQ, C), lambda b, i: (b, i, 0)),    # x residual
            pl.BlockSpec(memory_space=pltpu.MemorySpace.SMEM),   # gamma scalar
        ],
        out_specs=(
            pl.BlockSpec((1, TQ, C), lambda b, i: (b, i, 0)),
            pl.BlockSpec((1, TQ, N), lambda b, i: (b, i, 0)),
        ),
        compiler_params=pltpu.CompilerParams(
            dimension_semantics=("parallel", "parallel"),
            vmem_limit_bytes=32 * 1024 * 1024,
        ),
    )(q, k, v, x_flat, gamma)

    out_nchw = jnp.transpose(out.reshape(B, W, H, C), (0, 3, 1, 2))
    return out_nchw, attn


# --------------------------------- demo --------------------------------------

if __name__ == "__main__":
    key = jax.random.PRNGKey(0)
    kx, kq, kk, kv, kbq, kbk, kbv = jax.random.split(key, 7)

    B, C, W, H = 2, 64, 16, 16          # in_dim=64 (divisible by 8), N = 256
    C8 = C // 8

    x = jax.random.normal(kx, (B, C, W, H), jnp.float32)
    params = dict(
        wq=0.05 * jax.random.normal(kq, (C8, C, 1, 1), jnp.float32),
        bq=0.05 * jax.random.normal(kbq, (C8,), jnp.float32),
        wk=0.05 * jax.random.normal(kk, (C8, C, 1, 1), jnp.float32),
        bk=0.05 * jax.random.normal(kbk, (C8,), jnp.float32),
        wv=0.05 * jax.random.normal(kv, (C, C, 1, 1), jnp.float32),
        bv=0.05 * jax.random.normal(kbv, (C,), jnp.float32),
        # nn.Parameter(torch.zeros(1)) at init; a nonzero value here exercises
        # the full gamma*out + x epilogue.
        gamma=jnp.asarray([0.5], jnp.float32),
    )

    out, attn = jax.jit(self_attn)(x, params)
    out = jax.block_until_ready(out)
    attn = jax.block_until_ready(attn)

    assert out.shape == (B, C, W, H)
    assert attn.shape == (B, W * H, W * H)
    assert bool(jnp.all(jnp.isfinite(out)))
    assert bool(jnp.all(jnp.isfinite(attn)))
    # softmax rows sum to ~1 (approx reciprocal => loose tolerance).
    row_sums = jnp.sum(attn, axis=-1)
    assert bool(jnp.all(jnp.abs(row_sums - 1.0) < 1e-2))

    print("KERNEL_OK")
</pallas_src>

<mosaic_0001>
module attributes {stable_mosaic.version = 11 : i64} {
  func.func @_qkv_proj_kernel(%arg0: i32, %arg1: memref<128x64xbf16, #tpu.memory_space<vmem>>, %arg2: memref<64x320xbf16, #tpu.memory_space<vmem>>, %arg3: memref<1x320xf32, #tpu.memory_space<vmem>>, %arg4: memref<128x128xbf16, #tpu.memory_space<vmem>>, %arg5: memref<128x128xbf16, #tpu.memory_space<vmem>>, %arg6: memref<128x64xbf16, #tpu.memory_space<vmem>>) attributes {dimension_semantics = [#tpu.dimension_semantics<parallel>], iteration_bounds = array<i64: 4>, scalar_prefetch = 0 : i64, scratch_operands = 0 : i64, tpu.core_type = #tpu.core_type<tc>, window_params = [{transform_indices = @transform_0, window_bounds = array<i64: 128, 64>}, {pipeline_mode = #tpu.pipeline_mode<synchronous>, transform_indices = @transform_1, window_bounds = array<i64: 64, 320>}, {pipeline_mode = #tpu.pipeline_mode<synchronous>, transform_indices = @transform_2, window_bounds = array<i64: 1, 320>}, {transform_indices = @transform_3, window_bounds = array<i64: 128, 128>}, {transform_indices = @transform_4, window_bounds = array<i64: 128, 128>}, {transform_indices = @transform_5, window_bounds = array<i64: 128, 64>}]} {
    %c0 = arith.constant 0 : index
    %c0_0 = arith.constant 0 : index
    %0 = vector.load %arg1[%c0, %c0_0] : memref<128x64xbf16, #tpu.memory_space<vmem>>, vector<128x64xbf16>
    %c0_1 = arith.constant 0 : index
    %c0_2 = arith.constant 0 : index
    %1 = vector.load %arg2[%c0_1, %c0_2] : memref<64x320xbf16, #tpu.memory_space<vmem>>, vector<64x320xbf16>
    %cst = arith.constant dense<0.000000e+00> : vector<128x320xf32>
    %2 = tpu.matmul %0, %1, %cst {dimension_numbers = #tpu.dot_dimension_numbers<[1], [0], [0], [1], [0, 0, 1, 1], [], []>} : vector<128x64xbf16>, vector<64x320xbf16>, vector<128x320xf32> -> vector<128x320xf32>
    %c0_3 = arith.constant 0 : index
    %c0_4 = arith.constant 0 : index
    %3 = vector.load %arg3[%c0_3, %c0_4] : memref<1x320xf32, #tpu.memory_space<vmem>>, vector<1x320xf32>
    %4 = vector.broadcast %3 : vector<1x320xf32> to vector<128x320xf32>
    %5 = arith.addf %2, %4 : vector<128x320xf32>
    %6 = vector.extract_strided_slice %5 {offsets = [0, 0], sizes = [128, 128], strides = [1, 1]} : vector<128x320xf32> to vector<128x128xf32>
    %7 = arith.truncf %6 : vector<128x128xf32> to vector<128x128xbf16>
    %c0_5 = arith.constant 0 : index
    %c0_6 = arith.constant 0 : index
    %8 = vector.load %arg4[%c0_5, %c0_6] : memref<128x128xbf16, #tpu.memory_space<vmem>>, vector<128x128xbf16>
    tpu.vector_store %arg4[%c0_5, %c0_6], %7 {strides = array<i32>} : memref<128x128xbf16, #tpu.memory_space<vmem>>, vector<128x128xbf16>,
    %9 = vector.extract_strided_slice %5 {offsets = [0, 128], sizes = [128, 128], strides = [1, 1]} : vector<128x320xf32> to vector<128x128xf32>
    %10 = arith.truncf %9 : vector<128x128xf32> to vector<128x128xbf16>
    %c0_7 = arith.constant 0 : index
    %c0_8 = arith.constant 0 : index
    %11 = vector.load %arg5[%c0_7, %c0_8] : memref<128x128xbf16, #tpu.memory_space<vmem>>, vector<128x128xbf16>
    tpu.vector_store %arg5[%c0_7, %c0_8], %10 {strides = array<i32>} : memref<128x128xbf16, #tpu.memory_space<vmem>>, vector<128x128xbf16>,
    %12 = vector.extract_strided_slice %5 {offsets = [0, 256], sizes = [128, 64], strides = [1, 1]} : vector<128x320xf32> to vector<128x64xf32>
    %13 = arith.truncf %12 : vector<128x64xf32> to vector<128x64xbf16>
    %c0_9 = arith.constant 0 : index
    %c0_10 = arith.constant 0 : index
    %14 = vector.load %arg6[%c0_9, %c0_10] : memref<128x64xbf16, #tpu.memory_space<vmem>>, vector<128x64xbf16>
    tpu.vector_store %arg6[%c0_9, %c0_10], %13 {strides = array<i32>} : memref<128x64xbf16, #tpu.memory_space<vmem>>, vector<128x64xbf16>,
    return
  }
  func.func @transform_0(%arg0: i32) -> (i32, i32) {
    %c0_i32 = arith.constant 0 : i32
    %c0_i32_0 = arith.constant 0 : i32
    return %arg0, %c0_i32 : i32, i32
  }
  func.func @transform_1(%arg0: i32) -> (i32, i32) {
    %c0_i32 = arith.constant 0 : i32
    %c0_i32_0 = arith.constant 0 : i32
    %c0_i32_1 = arith.constant 0 : i32
    return %c0_i32, %c0_i32_0 : i32, i32
  }
  func.func @transform_2(%arg0: i32) -> (i32, i32) {
    %c0_i32 = arith.constant 0 : i32
    %c0_i32_0 = arith.constant 0 : i32
    %c0_i32_1 = arith.constant 0 : i32
    return %c0_i32, %c0_i32_0 : i32, i32
  }
  func.func @transform_3(%arg0: i32) -> (i32, i32) {
    %c0_i32 = arith.constant 0 : i32
    %c0_i32_0 = arith.constant 0 : i32
    return %arg0, %c0_i32 : i32, i32
  }
  func.func @transform_4(%arg0: i32) -> (i32, i32) {
    %c0_i32 = arith.constant 0 : i32
    %c0_i32_0 = arith.constant 0 : i32
    return %arg0, %c0_i32 : i32, i32
  }
  func.func @transform_5(%arg0: i32) -> (i32, i32) {
    %c0_i32 = arith.constant 0 : i32
    %c0_i32_0 = arith.constant 0 : i32
    return %arg0, %c0_i32 : i32, i32
  }
}

module attributes {stable_mosaic.version = 11 : i64} {
  func.func @_attn_kernel(%arg0: i32, %arg1: i32, %arg2: memref<1x128x128xbf16, #tpu.memory_space<vmem>>, %arg3: memref<1x256x128xbf16, #tpu.memory_space<vmem>>, %arg4: memref<1x256x64xbf16, #tpu.memory_space<vmem>>, %arg5: memref<1x128x64xf32, #tpu.memory_space<vmem>>, %arg6: memref<1x1xf32, #tpu.memory_space<smem>>, %arg7: memref<1x128x64xf32, #tpu.memory_space<vmem>>, %arg8: memref<1x128x256xf32, #tpu.memory_space<vmem>>) attributes {dimension_semantics = [#tpu.dimension_semantics<parallel>, #tpu.dimension_semantics<parallel>], iteration_bounds = array<i64: 2, 2>, scalar_prefetch = 0 : i64, scratch_operands = 0 : i64, tpu.core_type = #tpu.core_type<tc>, window_params = [{transform_indices = @transform_0, window_bounds = array<i64: 1, 128, 128>}, {transform_indices = @transform_1, window_bounds = array<i64: 1, 256, 128>}, {transform_indices = @transform_2, window_bounds = array<i64: 1, 256, 64>}, {transform_indices = @transform_3, window_bounds = array<i64: 1, 128, 64>}, {transform_indices = @transform_4, window_bounds = array<i64: 1, 1>}, {transform_indices = @transform_5, window_bounds = array<i64: 1, 128, 64>}, {transform_indices = @transform_6, window_bounds = array<i64: 1, 128, 256>}]} {
    %c0 = arith.constant 0 : index
    %c0_0 = arith.constant 0 : index
    %c0_1 = arith.constant 0 : index
    %0 = vector.load %arg2[%c0, %c0_0, %c0_1] : memref<1x128x128xbf16, #tpu.memory_space<vmem>>, vector<1x128x128xbf16>
    %1 = vector.shape_cast %0 : vector<1x128x128xbf16> to vector<128x128xbf16>
    %c0_2 = arith.constant 0 : index
    %c0_3 = arith.constant 0 : index
    %c0_4 = arith.constant 0 : index
    %2 = vector.load %arg3[%c0_2, %c0_3, %c0_4] : memref<1x256x128xbf16, #tpu.memory_space<vmem>>, vector<1x256x128xbf16>
    %3 = vector.shape_cast %2 : vector<1x256x128xbf16> to vector<256x128xbf16>
    %c0_5 = arith.constant 0 : index
    %c0_6 = arith.constant 0 : index
    %c0_7 = arith.constant 0 : index
    %4 = vector.load %arg4[%c0_5, %c0_6, %c0_7] : memref<1x256x64xbf16, #tpu.memory_space<vmem>>, vector<1x256x64xbf16>
    %5 = vector.shape_cast %4 : vector<1x256x64xbf16> to vector<256x64xbf16>
    %cst = arith.constant dense<0.000000e+00> : vector<128x256xf32>
    %6 = tpu.matmul %1, %3, %cst {dimension_numbers = #tpu.dot_dimension_numbers<[1], [1], [0], [0], [0, 0, 1, 0], [], []>} : vector<128x128xbf16>, vector<256x128xbf16>, vector<128x256xf32> -> vector<128x256xf32>
    %cst_8 = arith.constant dense<0xFF800000> : vector<128xf32>
    %7 = vector.multi_reduction <maximumf>, %6, %cst_8 [1] : vector<128x256xf32> to vector<128xf32>
    %8 = vector.shape_cast %7 : vector<128xf32> to vector<128x1xf32>
    %9 = vector.broadcast %8 : vector<128x1xf32> to vector<128x256xf32>
    %10 = arith.subf %6, %9 : vector<128x256xf32>
    %11 = math.exp %10 : vector<128x256xf32>
    %cst_9 = arith.constant dense<0.000000e+00> : vector<128xf32>
    %12 = vector.multi_reduction <add>, %11, %cst_9 [1] : vector<128x256xf32> to vector<128xf32>
    %13 = vector.shape_cast %12 : vector<128xf32> to vector<128x1xf32>
    %14 = tpu.reciprocal %13 {approx = true} : vector<128x1xf32> -> vector<128x1xf32>
    %15 = vector.broadcast %14 : vector<128x1xf32> to vector<128x256xf32>
    %16 = arith.mulf %11, %15 : vector<128x256xf32>
    %c0_10 = arith.constant 0 : index
    %c0_11 = arith.constant 0 : index
    %c0_12 = arith.constant 0 : index
    %17 = vector.load %arg8[%c0_10, %c0_11, %c0_12] : memref<1x128x256xf32, #tpu.memory_space<vmem>>, vector<1x128x256xf32>
    %18 = vector.shape_cast %17 : vector<1x128x256xf32> to vector<128x256xf32>
    %19 = vector.shape_cast %16 : vector<128x256xf32> to vector<1x128x256xf32>
    tpu.vector_store %arg8[%c0_10, %c0_11, %c0_12], %19 {strides = array<i32>} : memref<1x128x256xf32, #tpu.memory_space<vmem>>, vector<1x128x256xf32>,
    %20 = arith.truncf %16 : vector<128x256xf32> to vector<128x256xbf16>
    %cst_13 = arith.constant dense<0.000000e+00> : vector<128x64xf32>
    %21 = tpu.matmul %20, %5, %cst_13 {dimension_numbers = #tpu.dot_dimension_numbers<[1], [0], [0], [1], [0, 0, 1, 1], [], []>} : vector<128x256xbf16>, vector<256x64xbf16>, vector<128x64xf32> -> vector<128x64xf32>
    %c0_14 = arith.constant 0 : index
    %c0_15 = arith.constant 0 : index
    %22 = memref.load %arg6[%c0_14, %c0_15] : memref<1x1xf32, #tpu.memory_space<smem>>
    %23 = vector.broadcast %22 : f32 to vector<128x64xf32>
    %24 = arith.mulf %23, %21 : vector<128x64xf32>
    %c0_16 = arith.constant 0 : index
    %c0_17 = arith.constant 0 : index
    %c0_18 = arith.constant 0 : index
    %25 = vector.load %arg5[%c0_16, %c0_17, %c0_18] : memref<1x128x64xf32, #tpu.memory_space<vmem>>, vector<1x128x64xf32>
    %26 = vector.shape_cast %25 : vector<1x128x64xf32> to vector<128x64xf32>
    %27 = arith.addf %24, %26 : vector<128x64xf32>
    %c0_19 = arith.constant 0 : index
    %c0_20 = arith.constant 0 : index
    %c0_21 = arith.constant 0 : index
    %28 = vector.load %arg7[%c0_19, %c0_20, %c0_21] : memref<1x128x64xf32, #tpu.memory_space<vmem>>, vector<1x128x64xf32>
    %29 = vector.shape_cast %28 : vector<1x128x64xf32> to vector<128x64xf32>
    %30 = vector.shape_cast %27 : vector<128x64xf32> to vector<1x128x64xf32>
    tpu.vector_store %arg7[%c0_19, %c0_20, %c0_21], %30 {strides = array<i32>} : memref<1x128x64xf32, #tpu.memory_space<vmem>>, vector<1x128x64xf32>,
    return
  }
  func.func @transform_0(%arg0: i32, %arg1: i32) -> (i32, i32, i32) {
    %c0_i32 = arith.constant 0 : i32
    %c0_i32_0 = arith.constant 0 : i32
    return %arg0, %arg1, %c0_i32 : i32, i32, i32
  }
  func.func @transform_1(%arg0: i32, %arg1: i32) -> (i32, i32, i32) {
    %c0_i32 = arith.constant 0 : i32
    %c0_i32_0 = arith.constant 0 : i32
    %c0_i32_1 = arith.constant 0 : i32
    return %arg0, %c0_i32, %c0_i32_0 : i32, i32, i32
  }
  func.func @transform_2(%arg0: i32, %arg1: i32) -> (i32, i32, i32) {
    %c0_i32 = arith.constant 0 : i32
    %c0_i32_0 = arith.constant 0 : i32
    %c0_i32_1 = arith.constant 0 : i32
    return %arg0, %c0_i32, %c0_i32_0 : i32, i32, i32
  }
  func.func @transform_3(%arg0: i32, %arg1: i32) -> (i32, i32, i32) {
    %c0_i32 = arith.constant 0 : i32
    %c0_i32_0 = arith.constant 0 : i32
    return %arg0, %arg1, %c0_i32 : i32, i32, i32
  }
  func.func @transform_4(%arg0: i32, %arg1: i32) -> (i32, i32) {
    %c0_i32 = arith.constant 0 : i32
    %c0_i32_0 = arith.constant 0 : i32
    %c0_i32_1 = arith.constant 0 : i32
    return %c0_i32, %c0_i32_0 : i32, i32
  }
  func.func @transform_5(%arg0: i32, %arg1: i32) -> (i32, i32, i32) {
    %c0_i32 = arith.constant 0 : i32
    %c0_i32_0 = arith.constant 0 : i32
    return %arg0, %arg1, %c0_i32 : i32, i32, i32
  }
  func.func @transform_6(%arg0: i32, %arg1: i32) -> (i32, i32, i32) {
    %c0_i32 = arith.constant 0 : i32
    %c0_i32_0 = arith.constant 0 : i32
    return %arg0, %arg1, %c0_i32 : i32, i32, i32
  }
}

</mosaic_0001>

<llo_original>
// kernel: self_attn.2
$region0: #{self_attn.2}
  #allocation0 [shape = 'u32[]', space=smem, size = 0x4, offset = 0x4, fixed_abs, tag = 'smem constant byte address 0x4 - core index']
  #allocation1 [shape = 'u32[72,128]{1,0:T(1,128)}', space=vmem, size = 0x9000, scoped, tag = 'internal scratch']
  %s0 = inlined_call_operand.vmem [shape: bf16[512,64], index: 0, kind: input, shape index: {}]
  %s1 = inlined_call_operand.vmem [shape: bf16[64,320], index: 1, kind: input, shape index: {}]
  %s2 = inlined_call_operand.vmem [shape: f32[1,320], index: 2, kind: input, shape index: {}]
  %s3 = inlined_call_operand.vmem [shape: bf16[512,128], index: 3, kind: output, shape index: {0}]
  %s4 = inlined_call_operand.vmem [shape: bf16[512,128], index: 4, kind: output, shape index: {1}]
  %s5 = inlined_call_operand.vmem [shape: bf16[512,64], index: 5, kind: output, shape index: {2}]
  %6 = xla_tuple %s3, %s4, %s5
  %s7 = sld [smem:[#allocation0]]
  $region61: #{self_attn.2} parent=0
    _
  %s9 = ssub.s32 1, %s7
  %s10 = scalar_select 0, %s9, %s7
  loop: start=0, step=1, limit=6
  $region2: #{self_attn.2} parent=0 // loop_pre_header
    _
  $region3: #{self_attn.2} parent=0 // loop_header
    %s12 = sphi 0, %s16
    %p13 = scmp.ge.s32.totalorder %s12, 6
    %s22 = sphi 0, %s24
    %s25 = sphi 0, %s22
    %s26 = sphi 0, %s25
    %s42 = sphi 0, %s26
    %s46 = sphi 0, %s46
    %s48 = sphi 0, %s46
    %s49 = sphi 0, %s48
    %s63 = sphi 0, %s49
    %s67 = sphi 0, %s67
    %s69 = sphi 0, %s67
    %s70 = sphi 0, %s69
    %s84 = sphi 0, %s70
    %s90 = sphi 0, %s92
    %s93 = sphi 0, %s90
    %s94 = sphi 0, %s93
    %s110 = sphi 0, %s94
    %s116 = sphi 0, %s118
    %s119 = sphi 0, %s116
    %s120 = sphi 0, %s119
    %s136 = sphi 0, %s120
    %s142 = sphi 0, %s144
    %s145 = sphi 0, %s142
    %s146 = sphi 0, %s145
    %s162 = sphi 0, %s146
  $region4: #{self_attn.2} parent=0 // loop_header_branch
    %15 = sbr.rel (%p13) target = $region8
  $region5: #{self_attn.2} parent=0 // loop_body
    %s17 = ssub.s32 %s12, 1
    %s18 = ssub.s32 %s12, 2
    %s19 = sadd.s32 %s12, 1
    %s20 = ssub.s32 %s12, %s19
    %p21 = scmp.eq.s32.totalorder %s20, 0
    %s23 = sadd.s32 %s22, 1
    %s24 = scalar_select %p21, %s22, %s23
    %p27 = pneg %p21
    %p28 = scmp.eq.s32.totalorder %s12, 3
    %p29 = por %p27, %p28
    %p30 = scmp.ne.s32.totalorder %s22, %s25
    %p31 = scmp.eq.s32.totalorder %s12, 0
    %p32 = por %p30, %p31
    %p33 = scmp.ne.s32.totalorder %s22, %s25
    %p34 = scmp.eq.s32.totalorder %s17, 3
    %p35 = por %p33, %p34
    %p36 = scmp.ne.s32.totalorder %s25, %s26
    %p37 = scmp.eq.s32.totalorder %s17, 0
    %p38 = por %p36, %p37
    %p39 = scmp.ne.s32.totalorder %s25, %s26
    %p40 = scmp.eq.s32.totalorder %s18, 3
    %p41 = por %p39, %p40
    %p43 = scmp.ne.s32.totalorder %s26, %s42
    %p44 = scmp.eq.s32.totalorder %s18, 0
    %p45 = por %p43, %p44
    %s47 = sadd.s32 %s46, 1
    %p50 = scmp.eq.s32.totalorder %s12, 3
    %p51 = scmp.ne.s32.totalorder %s46, %s48
    %p52 = scmp.eq.s32.totalorder %s12, 0
    %p53 = por %p51, %p52
    %p54 = scmp.ne.s32.totalorder %s46, %s48
    %p55 = scmp.eq.s32.totalorder %s17, 3
    %p56 = por %p54, %p55
    %p57 = scmp.ne.s32.totalorder %s48, %s49
    %p58 = scmp.eq.s32.totalorder %s17, 0
    %p59 = por %p57, %p58
    %p60 = scmp.ne.s32.totalorder %s48, %s49
    %p61 = scmp.eq.s32.totalorder %s18, 3
    %p62 = por %p60, %p61
    %p64 = scmp.ne.s32.totalorder %s49, %s63
    %p65 = scmp.eq.s32.totalorder %s18, 0
    %p66 = por %p64, %p65
    %s68 = sadd.s32 %s67, 1
    %p71 = scmp.eq.s32.totalorder %s12, 3
    %p72 = scmp.ne.s32.totalorder %s67, %s69
    %p73 = scmp.eq.s32.totalorder %s12, 0
    %p74 = por %p72, %p73
    %p75 = scmp.ne.s32.totalorder %s67, %s69
    %p76 = scmp.eq.s32.totalorder %s17, 3
    %p77 = por %p75, %p76
    %p78 = scmp.ne.s32.totalorder %s69, %s70
    %p79 = scmp.eq.s32.totalorder %s17, 0
    %p80 = por %p78, %p79
    %p81 = scmp.ne.s32.totalorder %s69, %s70
    %p82 = scmp.eq.s32.totalorder %s18, 3
    %p83 = por %p81, %p82
    %p85 = scmp.ne.s32.totalorder %s70, %s84
    %p86 = scmp.eq.s32.totalorder %s18, 0
    %p87 = por %p85, %p86
    %s88 = ssub.s32 %s12, %s19
    %p89 = scmp.eq.s32.totalorder %s88, 0
    %s91 = sadd.s32 %s90, 1
    %s92 = scalar_select %p89, %s90, %s91
    %p95 = pneg %p89
    %p96 = scmp.eq.s32.totalorder %s12, 3
    %p97 = por %p95, %p96
    %p98 = scmp.ne.s32.totalorder %s90, %s93
    %p99 = scmp.eq.s32.totalorder %s12, 0
    %p100 = por %p98, %p99
    %p101 = scmp.ne.s32.totalorder %s90, %s93
    %p102 = scmp.eq.s32.totalorder %s17, 3
    %p103 = por %p101, %p102
    %p104 = scmp.ne.s32.totalorder %s93, %s94
    %p105 = scmp.eq.s32.totalorder %s17, 0
    %p106 = por %p104, %p105
    %p107 = scmp.ne.s32.totalorder %s93, %s94
    %p108 = scmp.eq.s32.totalorder %s18, 3
    %p109 = por %p107, %p108
    %p111 = scmp.ne.s32.totalorder %s94, %s110
    %p112 = scmp.eq.s32.totalorder %s18, 0
    %p113 = por %p111, %p112
    %s114 = ssub.s32 %s12, %s19
    %p115 = scmp.eq.s32.totalorder %s114, 0
    %s117 = sadd.s32 %s116, 1
    %s118 = scalar_select %p115, %s116, %s117
    %p121 = pneg %p115
    %p122 = scmp.eq.s32.totalorder %s12, 3
    %p123 = por %p121, %p122
    %p124 = scmp.ne.s32.totalorder %s116, %s119
    %p125 = scmp.eq.s32.totalorder %s12, 0
    %p126 = por %p124, %p125
    %p127 = scmp.ne.s32.totalorder %s116, %s119
    %p128 = scmp.eq.s32.totalorder %s17, 3
    %p129 = por %p127, %p128
    %p130 = scmp.ne.s32.totalorder %s119, %s120
    %p131 = scmp.eq.s32.totalorder %s17, 0
    %p132 = por %p130, %p131
    %p133 = scmp.ne.s32.totalorder %s119, %s120
    %p134 = scmp.eq.s32.totalorder %s18, 3
    %p135 = por %p133, %p134
    %p137 = scmp.ne.s32.totalorder %s120, %s136
    %p138 = scmp.eq.s32.totalorder %s18, 0
    %p139 = por %p137, %p138
    %s140 = ssub.s32 %s12, %s19
    %p141 = scmp.eq.s32.totalorder %s140, 0
    %s143 = sadd.s32 %s142, 1
    %s144 = scalar_select %p141, %s142, %s143
    %p147 = pneg %p141
    %p148 = scmp.eq.s32.totalorder %s12, 3
    %p149 = por %p147, %p148
    %p150 = scmp.ne.s32.totalorder %s142, %s145
    %p151 = scmp.eq.s32.totalorder %s12, 0
    %p152 = por %p150, %p151
    %p153 = scmp.ne.s32.totalorder %s142, %s145
    %p154 = scmp.eq.s32.totalorder %s17, 3
    %p155 = por %p153, %p154
    %p156 = scmp.ne.s32.totalorder %s145, %s146
    %p157 = scmp.eq.s32.totalorder %s17, 0
    %p158 = por %p156, %p157
    %p159 = scmp.ne.s32.totalorder %s145, %s146
    %p160 = scmp.eq.s32.totalorder %s18, 3
    %p161 = por %p159, %p160
    %p163 = scmp.ne.s32.totalorder %s146, %s162
    %p164 = scmp.eq.s32.totalorder %s18, 0
    %p165 = por %p163, %p164
    %p166 = scmp.le.s32.totalorder 1, %s12
    %p167 = scmp.lt.s32.totalorder %s12, 5
    %p168 = pnand %p166, %p167
    %p169 = pneg %p168
    // Predicated region
    $region9: #{self_attn.2} parent=5 // pred_check
      _
    $region10: #{self_attn.2} parent=5 // pred_check_branch
      %171 = sbr.rel (%p168) target = $region12
    $region11: #{self_attn.2} parent=5 // pred_region
      %s172 = ssub.s32 %s12, 1
      // Predicated region
      $region13: #{self_attn.2} parent=11 // pred_check
        %p173 = pneg %p59
      $region14: #{self_attn.2} parent=11 // pred_check_branch
        %175 = sbr.rel (%p173) target = $region16
      $region15: #{self_attn.2} parent=11 // pred_region
        _
      $region16: #{self_attn.2} parent=11 // pred_fallthru
        _
      // Predicated region
      $region17: #{self_attn.2} parent=11 // pred_check
        %p176 = pneg %p80
      $region18: #{self_attn.2} parent=11 // pred_check_branch
        %178 = sbr.rel (%p176) target = $region20
      $region19: #{self_attn.2} parent=11 // pred_region
        _
      $region20: #{self_attn.2} parent=11 // pred_fallthru
        _
    $region12: #{self_attn.2} parent=5 // pred_fallthru
      _
    %p179 = scmp.lt.s32.totalorder %s12, 4
    // Predicated region
    $region21: #{self_attn.2} parent=5 // pred_check
      %p180 = pneg %p179
    $region22: #{self_attn.2} parent=5 // pred_check_branch
      %182 = sbr.rel (%p180) target = $region24
    $region23: #{self_attn.2} parent=5 // pred_region
      // Predicated region
      $region25: #{self_attn.2} parent=23 // pred_check
        %p183 = pneg %p32
      $region26: #{self_attn.2} parent=23 // pred_check_branch
        %185 = sbr.rel (%p183) target = $region28
      $region27: #{self_attn.2} parent=23 // pred_region
        %s186 = smul.u32 16, %s12
        %p187 = scmp.lt.s32.totalorder %s186, 63
        %s188 = scalar_select %p187, %s186, 63
        %s189 = smul.addr %s188, 4
        %s190 = scalar_lea.vmem %s0, %s189
        %s191 = smul.u32 16, %s12
      $region28: #{self_attn.2} parent=23 // pred_fallthru
        _
    $region24: #{self_attn.2} parent=5 // pred_fallthru
      _
    %p192 = scmp.le.s32.totalorder 1, %s12
    %p193 = scmp.lt.s32.totalorder %s12, 5
    %p194 = pnand %p192, %p193
    %p195 = pneg %p194
    // Predicated region
    $region29: #{self_attn.2} parent=5 // pred_check
      _
    $region30: #{self_attn.2} parent=5 // pred_check_branch
      %197 = sbr.rel (%p194) target = $region32
    $region31: #{self_attn.2} parent=5 // pred_region
      %s198 = ssub.s32 %s12, 1
      %s199 = smul.u32 16, %s17
      %p200 = scmp.lt.s32.totalorder %s199, 63
      %s201 = scalar_select %p200, %s199, 63
      %s202 = smul.addr %s201, 4
      %s203 = scalar_lea.vmem %s0, %s202
      %p204 = pneg %p38
      %p205 = pneg %p35
      %p206 = pneg %p59
      %p207 = pneg %p56
      %p208 = pneg %p80
      %p209 = pneg %p77
      %p210 = pneg %p106
      %p211 = pneg %p103
      %s212 = smul.u32 16, %s17
      %p213 = scmp.lt.s32.totalorder %s212, 63
      %s214 = scalar_select %p213, %s212, 63
      %s215 = smul.addr %s214, 4
      %s216 = scalar_lea.vmem %s3, %s215
      %p217 = pneg %p132
      %p218 = pneg %p129
      %s219 = smul.u32 16, %s17
      %p220 = scmp.lt.s32.totalorder %s219, 63
      %s221 = scalar_select %p220, %s219, 63
      %s222 = smul.addr %s221, 4
      %s223 = scalar_lea.vmem %s4, %s222
      %p224 = pneg %p158
      %p225 = pneg %p155
      %s226 = smul.u32 16, %s17
      %p227 = scmp.lt.s32.totalorder %s226, 63
      %s228 = scalar_select %p227, %s226, 63
      %s229 = smul.addr %s228, 4
      %s230 = scalar_lea.vmem %s5, %s229
      %s231 = smul.u32 16, %s17
      %p232 = scmp.lt.s32.totalorder %s231, 63
      %s233 = scalar_select %p232, %s231, 63
      %s234 = smul.addr %s233, 4
      %s235 = scalar_lea.vmem %s0, %s234
      %s236 = smul.u32 16, %s17
      %s237 = smul.u32 16, %s17
      %p238 = scmp.lt.s32.totalorder %s237, 63
      %s239 = scalar_select %p238, %s237, 63
      %s240 = smul.addr %s239, 4
      %s241 = scalar_lea.vmem %s3, %s240
      %s242 = smul.u32 16, %s17
      %s243 = smul.u32 16, %s17
      %p244 = scmp.lt.s32.totalorder %s243, 63
      %s245 = scalar_select %p244, %s243, 63
      %s246 = smul.addr %s245, 4
      %s247 = scalar_lea.vmem %s4, %s246
      %s248 = smul.u32 16, %s17
      %s249 = smul.u32 16, %s17
      %p250 = scmp.lt.s32.totalorder %s249, 63
      %s251 = scalar_select %p250, %s249, 63
      %s252 = smul.addr %s251, 4
      %s253 = scalar_lea.vmem %s5, %s252
      %s254 = smul.u32 16, %s17
      %v256 = vld [vmem:[%s235] sm:$0xf]
      %v257 = vld [vmem:[%s235 + $0x4] sm:$0xf]
      %v258 = vld [vmem:[%s235 + $0x8] sm:$0xf]
      %v259 = vld [vmem:[%s235 + $0xc] sm:$0xf]
      %v260 = vld [vmem:[%s235 + $0x10] sm:$0xf]
      %v261 = vld [vmem:[%s235 + $0x14] sm:$0xf]
      %v262 = vld [vmem:[%s235 + $0x18] sm:$0xf]
      %v263 = vld [vmem:[%s235 + $0x1c] sm:$0xf]
      %v264 = vld [vmem:[%s235 + $0x20] sm:$0xf]
      %v265 = vld [vmem:[%s235 + $0x24] sm:$0xf]
      %v266 = vld [vmem:[%s235 + $0x28] sm:$0xf]
      %v267 = vld [vmem:[%s235 + $0x2c] sm:$0xf]
      %v268 = vld [vmem:[%s235 + $0x30] sm:$0xf]
      %v269 = vld [vmem:[%s235 + $0x34] sm:$0xf]
      %v270 = vld [vmem:[%s235 + $0x38] sm:$0xf]
      %v271 = vld [vmem:[%s235 + $0x3c] sm:$0xf]
      %v272 = vld [vmem:[%s1] sm:$0xff]
      %v273 = vld [vmem:[%s1 + $0x8] sm:$0xf]
      %v274 = vld [vmem:[%s1 + $0xc] sm:$0xff]
      %v275 = vld [vmem:[%s1 + $0x14] sm:$0xf]
      %v276 = vld [vmem:[%s1 + $0x18] sm:$0xff]
      %v277 = vld [vmem:[%s1 + $0x20] sm:$0xf]
      %v278 = vld [vmem:[%s1 + $0x24] sm:$0xff]
      %v279 = vld [vmem:[%s1 + $0x2c] sm:$0xf]
      %v280 = vld [vmem:[%s1 + $0x30] sm:$0xff]
      %v281 = vld [vmem:[%s1 + $0x38] sm:$0xf]
      %v282 = vld [vmem:[%s1 + $0x3c] sm:$0xff]
      %v283 = vld [vmem:[%s1 + $0x44] sm:$0xf]
      %v284 = vld [vmem:[%s1 + $0x48] sm:$0xff]
      %v285 = vld [vmem:[%s1 + $0x50] sm:$0xf]
      %v286 = vld [vmem:[%s1 + $0x54] sm:$0xff]
      %v287 = vld [vmem:[%s1 + $0x5c] sm:$0xf]
      %v288 = vld [vmem:[%s2] sm:$0x7]
      %v290 = vperm.slane %v288, 0
      %v291 = vperm.slane %v288, 1
      %v292 = vperm.slane %v288, 2
      %v312 = vunpack.c.l.b16 %v256
      %v313 = vunpack.c.l.b16 %v257
      %v314 = vunpack.c.l.b16 %v258
      %v315 = vunpack.c.l.b16 %v259
      %v316 = vunpack.c.l.b16 %v260
      %v317 = vunpack.c.l.b16 %v261
      %v318 = vunpack.c.l.b16 %v262
      %v319 = vunpack.c.l.b16 %v263
      %v320 = vunpack.c.l.b16 %v264
      %v321 = vunpack.c.l.b16 %v265
      %v322 = vunpack.c.l.b16 %v266
      %v323 = vunpack.c.l.b16 %v267
      %v324 = vunpack.c.l.b16 %v268
      %v325 = vunpack.c.l.b16 %v269
      %v326 = vunpack.c.l.b16 %v270
      %v327 = vunpack.c.l.b16 %v271
      %v328 = vpack.c.b16 %v313, %v312
      %v329 = vpack.c.b16 %v315, %v314
      %v330 = vpack.c.b16 %v317, %v316
      %v331 = vpack.c.b16 %v319, %v318
      %v332 = vpack.c.b16 %v321, %v320
      %v333 = vpack.c.b16 %v323, %v322
      %v334 = vpack.c.b16 %v325, %v324
      %v335 = vpack.c.b16 %v327, %v326
      %v352 = vunpack.c.l.b16 %v272
      %v353 = vunpack.c.h.b16 %v272
      %v354 = vunpack.c.l.b16 %v273
      %v355 = vunpack.c.l.b16 %v274
      %v356 = vunpack.c.h.b16 %v274
      %v357 = vunpack.c.l.b16 %v275
      %v358 = vunpack.c.l.b16 %v276
      %v359 = vunpack.c.h.b16 %v276
      %v360 = vunpack.c.l.b16 %v277
      %v361 = vunpack.c.l.b16 %v278
      %v362 = vunpack.c.h.b16 %v278
      %v363 = vunpack.c.l.b16 %v279
      %v364 = vunpack.c.l.b16 %v280
      %v365 = vunpack.c.h.b16 %v280
      %v366 = vunpack.c.l.b16 %v281
      %v367 = vunpack.c.l.b16 %v282
      %v368 = vunpack.c.h.b16 %v282
      %v369 = vunpack.c.l.b16 %v283
      %v370 = vunpack.c.l.b16 %v284
      %v371 = vunpack.c.h.b16 %v284
      %v372 = vunpack.c.l.b16 %v285
      %v373 = vunpack.c.l.b16 %v286
      %v374 = vunpack.c.h.b16 %v286
      %v375 = vunpack.c.l.b16 %v287
      %v376 = vpack.c.b16 %v355, %v352
      %v377 = vpack.c.b16 %v356, %v353
      %v378 = vpack.c.b16 %v357, %v354
      %v379 = vpack.c.b16 %v361, %v358
      %v380 = vpack.c.b16 %v362, %v359
      %v381 = vpack.c.b16 %v363, %v360
      %v382 = vpack.c.b16 %v367, %v364
      %v383 = vpack.c.b16 %v368, %v365
      %v384 = vpack.c.b16 %v369, %v366
      %v385 = vpack.c.b16 %v373, %v370
      %v386 = vpack.c.b16 %v374, %v371
      %v387 = vpack.c.b16 %v375, %v372
      %vm400 = vcmask 523264
      %v402 = vsel %vm400, %v328, 0
      %v405 = vsel %vm400, %v329, 0
      %v408 = vsel %vm400, %v330, 0
      %v411 = vsel %vm400, %v331, 0
      %v414 = vsel %vm400, %v332, 0
      %v417 = vsel %vm400, %v333, 0
      %v420 = vsel %vm400, %v334, 0
      %v423 = vsel %vm400, %v335, 0
      %425 = vmatpush.bf16.msra.mxu0 0
      %426 = vmatpush.bf16.msra.mxu0 0
      %427 = vmatpush.bf16.msra.mxu0 0
      %428 = vmatpush.bf16.msra.mxu0 0
      %429 = vmatpush.bf16.msra.mxu0 %v385
      %430 = vmatpush.bf16.msra.mxu0 %v382
      %431 = vmatpush.bf16.msra.mxu0 %v379
      %432 = vmatpush.bf16.msra.mxu0 %v376
      %433 = vmatmul.bf16.gmra.mxu0 %v402
      %v434 = vpop.f32.mrf.mxu0
      %v435 = vadd.f32 %v290, %v434
      %v436 = vpop.f32.mrf.mxu0
      %v437 = vadd.f32 %v290, %v436
      %438 = vmatmul.bf16.gmra.mxu0 %v405
      %v439 = vpop.f32.mrf.mxu0
      %v440 = vadd.f32 %v290, %v439
      %v441 = vpop.f32.mrf.mxu0
      %v442 = vadd.f32 %v290, %v441
      %443 = vmatmul.bf16.gmra.mxu0 %v408
      %v444 = vpop.f32.mrf.mxu0
      %v445 = vadd.f32 %v290, %v444
      %v446 = vpop.f32.mrf.mxu0
      %v447 = vadd.f32 %v290, %v446
      %448 = vmatmul.bf16.gmra.mxu0 %v411
      %v449 = vpop.f32.mrf.mxu0
      %v450 = vadd.f32 %v290, %v449
      %v451 = vpop.f32.mrf.mxu0
      %v452 = vadd.f32 %v290, %v451
      %453 = vmatmul.bf16.gmra.mxu0 %v414
      %v454 = vpop.f32.mrf.mxu0
      %v455 = vadd.f32 %v290, %v454
      %v456 = vpop.f32.mrf.mxu0
      %v457 = vadd.f32 %v290, %v456
      %458 = vmatmul.bf16.gmra.mxu0 %v417
      %v459 = vpop.f32.mrf.mxu0
      %v460 = vadd.f32 %v290, %v459
      %v461 = vpop.f32.mrf.mxu0
      %v462 = vadd.f32 %v290, %v461
      %463 = vmatmul.bf16.gmra.mxu0 %v420
      %v464 = vpop.f32.mrf.mxu0
      %v465 = vadd.f32 %v290, %v464
      %v466 = vpop.f32.mrf.mxu0
      %v467 = vadd.f32 %v290, %v466
      %468 = vmatmul.bf16.gmra.mxu0 %v423
      %v469 = vpop.f32.mrf.mxu0
      %v470 = vadd.f32 %v290, %v469
      %v471 = vpop.f32.mrf.mxu0
      %v472 = vadd.f32 %v290, %v471
      %473 = vdwg.mxu0
      %474 = vmatpush.bf16.msra.mxu0 0
      %475 = vmatpush.bf16.msra.mxu0 0
      %476 = vmatpush.bf16.msra.mxu0 0
      %477 = vmatpush.bf16.msra.mxu0 0
      %478 = vmatpush.bf16.msra.mxu0 %v386
      %479 = vmatpush.bf16.msra.mxu0 %v383
      %480 = vmatpush.bf16.msra.mxu0 %v380
      %481 = vmatpush.bf16.msra.mxu0 %v377
      %482 = vmatmul.bf16.gmra.mxu0 %v402
      %v483 = vpop.f32.mrf.mxu0
      %v484 = vadd.f32 %v291, %v483
      %v485 = vpop.f32.mrf.mxu0
      %v486 = vadd.f32 %v291, %v485
      %487 = vmatmul.bf16.gmra.mxu0 %v405
      %v488 = vpop.f32.mrf.mxu0
      %v489 = vadd.f32 %v291, %v488
      %v490 = vpop.f32.mrf.mxu0
      %v491 = vadd.f32 %v291, %v490
      %492 = vmatmul.bf16.gmra.mxu0 %v408
      %v493 = vpop.f32.mrf.mxu0
      %v494 = vadd.f32 %v291, %v493
      %v495 = vpop.f32.mrf.mxu0
      %v496 = vadd.f32 %v291, %v495
      %497 = vmatmul.bf16.gmra.mxu0 %v411
      %v498 = vpop.f32.mrf.mxu0
      %v499 = vadd.f32 %v291, %v498
      %v500 = vpop.f32.mrf.mxu0
      %v501 = vadd.f32 %v291, %v500
      %502 = vmatmul.bf16.gmra.mxu0 %v414
      %v503 = vpop.f32.mrf.mxu0
      %v504 = vadd.f32 %v291, %v503
      %v505 = vpop.f32.mrf.mxu0
      %v506 = vadd.f32 %v291, %v505
      %507 = vmatmul.bf16.gmra.mxu0 %v417
      %v508 = vpop.f32.mrf.mxu0
      %v509 = vadd.f32 %v291, %v508
      %v510 = vpop.f32.mrf.mxu0
      %v511 = vadd.f32 %v291, %v510
      %512 = vmatmul.bf16.gmra.mxu0 %v420
      %v513 = vpop.f32.mrf.mxu0
      %v514 = vadd.f32 %v291, %v513
      %v515 = vpop.f32.mrf.mxu0
      %v516 = vadd.f32 %v291, %v515
      %517 = vmatmul.bf16.gmra.mxu0 %v423
      %v518 = vpop.f32.mrf.mxu0
      %v519 = vadd.f32 %v291, %v518
      %v520 = vpop.f32.mrf.mxu0
      %v521 = vadd.f32 %v291, %v520
      %522 = vdwg.mxu0
      %523 = vmatpush.bf16.msra.mxu0 0
      %524 = vmatpush.bf16.msra.mxu0 0
      %525 = vmatpush.bf16.msra.mxu0 0
      %526 = vmatpush.bf16.msra.mxu0 0
      %527 = vmatpush.bf16.msra.mxu0 %v387
      %528 = vmatpush.bf16.msra.mxu0 %v384
      %529 = vmatpush.bf16.msra.mxu0 %v381
      %530 = vmatpush.bf16.msra.mxu0 %v378
      %531 = vmatmul.bf16.gmra.mxu0 %v402
      %v532 = vpop.f32.mrf.mxu0
      %v533 = vadd.f32 %v292, %v532
      %v534 = vpop.f32.mrf.mxu0
      %v535 = vadd.f32 %v292, %v534
      %536 = vmatmul.bf16.gmra.mxu0 %v405
      %v537 = vpop.f32.mrf.mxu0
      %v538 = vadd.f32 %v292, %v537
      %v539 = vpop.f32.mrf.mxu0
      %v540 = vadd.f32 %v292, %v539
      %541 = vmatmul.bf16.gmra.mxu0 %v408
      %v542 = vpop.f32.mrf.mxu0
      %v543 = vadd.f32 %v292, %v542
      %v544 = vpop.f32.mrf.mxu0
      %v545 = vadd.f32 %v292, %v544
      %546 = vmatmul.bf16.gmra.mxu0 %v411
      %v547 = vpop.f32.mrf.mxu0
      %v548 = vadd.f32 %v292, %v547
      %v549 = vpop.f32.mrf.mxu0
      %v550 = vadd.f32 %v292, %v549
      %551 = vmatmul.bf16.gmra.mxu0 %v414
      %v552 = vpop.f32.mrf.mxu0
      %v553 = vadd.f32 %v292, %v552
      %v554 = vpop.f32.mrf.mxu0
      %v555 = vadd.f32 %v292, %v554
      %556 = vmatmul.bf16.gmra.mxu0 %v417
      %v557 = vpop.f32.mrf.mxu0
      %v558 = vadd.f32 %v292, %v557
      %v559 = vpop.f32.mrf.mxu0
      %v560 = vadd.f32 %v292, %v559
      %561 = vmatmul.bf16.gmra.mxu0 %v420
      %v562 = vpop.f32.mrf.mxu0
      %v563 = vadd.f32 %v292, %v562
      %v564 = vpop.f32.mrf.mxu0
      %v565 = vadd.f32 %v292, %v564
      %566 = vmatmul.bf16.gmra.mxu0 %v423
      %v567 = vpop.f32.mrf.mxu0
      %v568 = vadd.f32 %v292, %v567
      %v569 = vpop.f32.mrf.mxu0
      %v570 = vadd.f32 %v292, %v569
      %571 = vdwg.mxu0
      %v572 = vpack.c.bf16 %v435, %v435
      %v573 = vpack.c.bf16 %v437, %v437
      %v574 = vpack.c.bf16 %v440, %v440
      %v575 = vpack.c.bf16 %v442, %v442
      %v576 = vpack.c.bf16 %v445, %v445
      %v577 = vpack.c.bf16 %v447, %v447
      %v578 = vpack.c.bf16 %v450, %v450
      %v579 = vpack.c.bf16 %v452, %v452
      %v580 = vpack.c.bf16 %v455, %v455
      %v581 = vpack.c.bf16 %v457, %v457
      %v582 = vpack.c.bf16 %v460, %v460
      %v583 = vpack.c.bf16 %v462, %v462
      %v584 = vpack.c.bf16 %v465, %v465
      %v585 = vpack.c.bf16 %v467, %v467
      %v586 = vpack.c.bf16 %v470, %v470
      %v587 = vpack.c.bf16 %v472, %v472
      %588 = vst [vmem:[%s241] sm:$0xf] %v572
      %589 = vst [vmem:[%s241 + $0x4] sm:$0xf] %v573
      %590 = vst [vmem:[%s241 + $0x8] sm:$0xf] %v574
      %591 = vst [vmem:[%s241 + $0xc] sm:$0xf] %v575
      %592 = vst [vmem:[%s241 + $0x10] sm:$0xf] %v576
      %593 = vst [vmem:[%s241 + $0x14] sm:$0xf] %v577
      %594 = vst [vmem:[%s241 + $0x18] sm:$0xf] %v578
      %595 = vst [vmem:[%s241 + $0x1c] sm:$0xf] %v579
      %596 = vst [vmem:[%s241 + $0x20] sm:$0xf] %v580
      %597 = vst [vmem:[%s241 + $0x24] sm:$0xf] %v581
      %598 = vst [vmem:[%s241 + $0x28] sm:$0xf] %v582
      %599 = vst [vmem:[%s241 + $0x2c] sm:$0xf] %v583
      %600 = vst [vmem:[%s241 + $0x30] sm:$0xf] %v584
      %601 = vst [vmem:[%s241 + $0x34] sm:$0xf] %v585
      %602 = vst [vmem:[%s241 + $0x38] sm:$0xf] %v586
      %603 = vst [vmem:[%s241 + $0x3c] sm:$0xf] %v587
      %v604 = vpack.c.bf16 %v484, %v484
      %v605 = vpack.c.bf16 %v486, %v486
      %v606 = vpack.c.bf16 %v489, %v489
      %v607 = vpack.c.bf16 %v491, %v491
      %v608 = vpack.c.bf16 %v494, %v494
      %v609 = vpack.c.bf16 %v496, %v496
      %v610 = vpack.c.bf16 %v499, %v499
      %v611 = vpack.c.bf16 %v501, %v501
      %v612 = vpack.c.bf16 %v504, %v504
      %v613 = vpack.c.bf16 %v506, %v506
      %v614 = vpack.c.bf16 %v509, %v509
      %v615 = vpack.c.bf16 %v511, %v511
      %v616 = vpack.c.bf16 %v514, %v514
      %v617 = vpack.c.bf16 %v516, %v516
      %v618 = vpack.c.bf16 %v519, %v519
      %v619 = vpack.c.bf16 %v521, %v521
      %620 = vst [vmem:[%s247] sm:$0xf] %v604
      %621 = vst [vmem:[%s247 + $0x4] sm:$0xf] %v605
      %622 = vst [vmem:[%s247 + $0x8] sm:$0xf] %v606
      %623 = vst [vmem:[%s247 + $0xc] sm:$0xf] %v607
      %624 = vst [vmem:[%s247 + $0x10] sm:$0xf] %v608
      %625 = vst [vmem:[%s247 + $0x14] sm:$0xf] %v609
      %626 = vst [vmem:[%s247 + $0x18] sm:$0xf] %v610
      %627 = vst [vmem:[%s247 + $0x1c] sm:$0xf] %v611
      %628 = vst [vmem:[%s247 + $0x20] sm:$0xf] %v612
      %629 = vst [vmem:[%s247 + $0x24] sm:$0xf] %v613
      %630 = vst [vmem:[%s247 + $0x28] sm:$0xf] %v614
      %631 = vst [vmem:[%s247 + $0x2c] sm:$0xf] %v615
      %632 = vst [vmem:[%s247 + $0x30] sm:$0xf] %v616
      %633 = vst [vmem:[%s247 + $0x34] sm:$0xf] %v617
      %634 = vst [vmem:[%s247 + $0x38] sm:$0xf] %v618
      %635 = vst [vmem:[%s247 + $0x3c] sm:$0xf] %v619
      %v636 = vpack.c.bf16 %v533, %v533
      %v637 = vpack.c.bf16 %v535, %v535
      %v638 = vpack.c.bf16 %v538, %v538
      %v639 = vpack.c.bf16 %v540, %v540
      %v640 = vpack.c.bf16 %v543, %v543
      %v641 = vpack.c.bf16 %v545, %v545
      %v642 = vpack.c.bf16 %v548, %v548
      %v643 = vpack.c.bf16 %v550, %v550
      %v644 = vpack.c.bf16 %v553, %v553
      %v645 = vpack.c.bf16 %v555, %v555
      %v646 = vpack.c.bf16 %v558, %v558
      %v647 = vpack.c.bf16 %v560, %v560
      %v648 = vpack.c.bf16 %v563, %v563
      %v649 = vpack.c.bf16 %v565, %v565
      %v650 = vpack.c.bf16 %v568, %v568
      %v651 = vpack.c.bf16 %v570, %v570
      %vm652 = vcmask 519168
      %653 = vst.msk [vmem:[%s253] sm:$0xf] %vm652, %v636
      %654 = vst.msk [vmem:[%s253 + $0x4] sm:$0xf] %vm652, %v637
      %655 = vst.msk [vmem:[%s253 + $0x8] sm:$0xf] %vm652, %v638
      %656 = vst.msk [vmem:[%s253 + $0xc] sm:$0xf] %vm652, %v639
      %657 = vst.msk [vmem:[%s253 + $0x10] sm:$0xf] %vm652, %v640
      %658 = vst.msk [vmem:[%s253 + $0x14] sm:$0xf] %vm652, %v641
      %659 = vst.msk [vmem:[%s253 + $0x18] sm:$0xf] %vm652, %v642
      %660 = vst.msk [vmem:[%s253 + $0x1c] sm:$0xf] %vm652, %v643
      %661 = vst.msk [vmem:[%s253 + $0x20] sm:$0xf] %vm652, %v644
      %662 = vst.msk [vmem:[%s253 + $0x24] sm:$0xf] %vm652, %v645
      %663 = vst.msk [vmem:[%s253 + $0x28] sm:$0xf] %vm652, %v646
      %664 = vst.msk [vmem:[%s253 + $0x2c] sm:$0xf] %vm652, %v647
      %665 = vst.msk [vmem:[%s253 + $0x30] sm:$0xf] %vm652, %v648
      %666 = vst.msk [vmem:[%s253 + $0x34] sm:$0xf] %vm652, %v649
      %667 = vst.msk [vmem:[%s253 + $0x38] sm:$0xf] %vm652, %v650
      %668 = vst.msk [vmem:[%s253 + $0x3c] sm:$0xf] %vm652, %v651
      %s669 = smul.u32 16, %s17
      %p670 = scmp.lt.s32.totalorder %s669, 63
      %s671 = scalar_select %p670, %s669, 63
      %s672 = smul.addr %s671, 4
      %s673 = scalar_lea.vmem %s3, %s672
      %s674 = smul.u32 16, %s17
      %p675 = scmp.lt.s32.totalorder %s674, 63
      %s676 = scalar_select %p675, %s674, 63
      %s677 = smul.addr %s676, 4
      %s678 = scalar_lea.vmem %s4, %s677
      %s679 = smul.u32 16, %s17
      %p680 = scmp.lt.s32.totalorder %s679, 63
      %s681 = scalar_select %p680, %s679, 63
      %s682 = smul.addr %s681, 4
      %s683 = scalar_lea.vmem %s5, %s682
      // Predicated region
      $region33: #{self_attn.2} parent=31 // pred_check
        %p684 = pneg %p103
      $region34: #{self_attn.2} parent=31 // pred_check_branch
        %686 = sbr.rel (%p684) target = $region36
      $region35: #{self_attn.2} parent=31 // pred_region
        %s687 = smul.u32 16, %s17
      $region36: #{self_attn.2} parent=31 // pred_fallthru
        _
      // Predicated region
      $region37: #{self_attn.2} parent=31 // pred_check
        %p688 = pneg %p129
      $region38: #{self_attn.2} parent=31 // pred_check_branch
        %690 = sbr.rel (%p688) target = $region40
      $region39: #{self_attn.2} parent=31 // pred_region
        %s691 = smul.u32 16, %s17
      $region40: #{self_attn.2} parent=31 // pred_fallthru
        _
      // Predicated region
      $region41: #{self_attn.2} parent=31 // pred_check
        %p692 = pneg %p155
      $region42: #{self_attn.2} parent=31 // pred_check_branch
        %694 = sbr.rel (%p692) target = $region44
      $region43: #{self_attn.2} parent=31 // pred_region
        %s695 = smul.u32 16, %s17
      $region44: #{self_attn.2} parent=31 // pred_fallthru
        _
    $region32: #{self_attn.2} parent=5 // pred_fallthru
      _
    %p696 = scmp.le.s32.totalorder 2, %s12
    // Predicated region
    $region45: #{self_attn.2} parent=5 // pred_check
      %p697 = pneg %p696
    $region46: #{self_attn.2} parent=5 // pred_check_branch
      %699 = sbr.rel (%p697) target = $region48
    $region47: #{self_attn.2} parent=5 // pred_region
      %s700 = ssub.s32 %s12, 2
      // Predicated region
      $region49: #{self_attn.2} parent=47 // pred_check
        %p701 = pneg %p109
      $region50: #{self_attn.2} parent=47 // pred_check_branch
        %703 = sbr.rel (%p701) target = $region52
      $region51: #{self_attn.2} parent=47 // pred_region
        %s704 = smul.u32 16, %s18
        %p705 = scmp.lt.s32.totalorder %s704, 63
        %s706 = scalar_select %p705, %s704, 63
        %s707 = smul.addr %s706, 4
        %s708 = scalar_lea.vmem %s3, %s707
      $region52: #{self_attn.2} parent=47 // pred_fallthru
        _
      // Predicated region
      $region53: #{self_attn.2} parent=47 // pred_check
        %p709 = pneg %p135
      $region54: #{self_attn.2} parent=47 // pred_check_branch
        %711 = sbr.rel (%p709) target = $region56
      $region55: #{self_attn.2} parent=47 // pred_region
        %s712 = smul.u32 16, %s18
        %p713 = scmp.lt.s32.totalorder %s712, 63
        %s714 = scalar_select %p713, %s712, 63
        %s715 = smul.addr %s714, 4
        %s716 = scalar_lea.vmem %s4, %s715
      $region56: #{self_attn.2} parent=47 // pred_fallthru
        _
      // Predicated region
      $region57: #{self_attn.2} parent=47 // pred_check
        %p717 = pneg %p161
      $region58: #{self_attn.2} parent=47 // pred_check_branch
        %719 = sbr.rel (%p717) target = $region60
      $region59: #{self_attn.2} parent=47 // pred_region
        %s720 = smul.u32 16, %s18
        %p721 = scmp.lt.s32.totalorder %s720, 63
        %s722 = scalar_select %p721, %s720, 63
        %s723 = smul.addr %s722, 4
        %s724 = scalar_lea.vmem %s5, %s723
      $region60: #{self_attn.2} parent=47 // pred_fallthru
        _
    $region48: #{self_attn.2} parent=5 // pred_fallthru
      _
  $region6: #{self_attn.2} parent=0 // loop_footer
    %s16 = sadd.s32 1, %s12
  $region7: #{self_attn.2} parent=0 // loop_footer_branch
    %11 = sbr.rel target = $region3
  $region8: #{self_attn.2} parent=0 // loop_exit
    _

// kernel: self_attn.3
$region0: #{self_attn.3}
  #allocation0 [shape = 'u32[]', space=smem, size = 0x4, offset = 0x4, fixed_abs, tag = 'smem constant byte address 0x4 - core index']
  #allocation1 [shape = 'u32[72,128]{1,0:T(1,128)}', space=vmem, size = 0x9000, scoped, tag = 'internal scratch']
  #allocation2 [shape = 'f32[1,1]{1,0:T(1,128)S(6)}', space=smem, size = 0x200, scoped, tag = 'scoped memory for self_attn.3']
  %s0 = inlined_call_operand.vmem [shape: bf16[2,256,128], index: 0, kind: input, shape index: {}]
  %s1 = inlined_call_operand.vmem [shape: bf16[2,256,128], index: 1, kind: input, shape index: {}]
  %s2 = inlined_call_operand.vmem [shape: bf16[2,256,64], index: 2, kind: input, shape index: {}]
  %s3 = inlined_call_operand.vmem [shape: f32[2,256,64], index: 3, kind: input, shape index: {}]
  %s4 = inlined_call_operand.<no memory space> [shape: f32[1,1], index: 4, kind: input, shape index: {}]
  %s5 = inlined_call_operand.hbm [shape: f32[2,256,64], index: 5, kind: output, shape index: {0}]
  %s6 = inlined_call_operand.hbm [shape: f32[2,256,256], index: 6, kind: output, shape index: {1}]
  %7 = xla_tuple %s5, %s6
  %s8 = sld [smem:[#allocation0]]
  $region61: #{self_attn.3} parent=0
    _
  %s10 = ssub.s32 1, %s8
  %s11 = scalar_select 0, %s10, %s8
  %12 = sst [smem:[#allocation2]] %s4
  $region1: #{self_attn.3} parent=0
    #allocation3 [shape = 'u8[131072]{0}', space=vmem, size = 0x20000, scoped, tag = 'output window, operand 0']
    #allocation4 [shape = 's32[2]{0}', space=sflag, size = 0x8, scoped, tag = 'scoped memory for self_attn.3']
    #allocation5 [shape = 'u8[262144]{0}', space=vmem, size = 0x40000, scoped, tag = 'output window, operand 1']
    #allocation6 [shape = 's32[2]{0}', space=sflag, size = 0x8, scoped, tag = 'scoped memory for self_attn.3']
    %13 = vsyncpa [#allocation4], 0
    %s14 = scalar_lea.sflag [#allocation4], 1
    %15 = vsyncpa %s14, 0
    %16 = vsyncpa [#allocation6], 0
    %s17 = scalar_lea.sflag [#allocation6], 1
    %18 = vsyncpa %s17, 0
    loop: start=0, step=1, limit=6
    $region2: #{self_attn.3} parent=1 // loop_pre_header
      _
    $region3: #{self_attn.3} parent=1 // loop_header
      %s20 = sphi 0, %s24
      %p21 = scmp.ge.s32.totalorder %s20, 6
      %s27 = sphi 0, %s39
      %s28 = sphi 0, %s35
      %s29 = sphi 0, %s27
      %s30 = sphi 0, %s28
      %s31 = sphi 0, %s29
      %s32 = sphi 0, %s30
      %s44 = sphi 0, %s46
      %s47 = sphi 0, %s44
      %s48 = sphi 0, %s47
      %s64 = sphi 0, %s48
      %s70 = sphi 0, %s72
      %s73 = sphi 0, %s70
      %s74 = sphi 0, %s73
      %s90 = sphi 0, %s74
      %s96 = sphi 0, %s98
      %s99 = sphi 0, %s96
      %s100 = sphi 0, %s99
      %s116 = sphi 0, %s100
      %s124 = sphi 0, %s126
      %s127 = sphi 0, %s124
      %s128 = sphi 0, %s127
      %s144 = sphi 0, %s128
      %s148 = sphi 0, %s148
      %s150 = sphi 0, %s148
      %s151 = sphi 0, %s150
      %s165 = sphi 0, %s151
      %s173 = sphi 0, %s175
      %s176 = sphi 0, %s173
      %s177 = sphi 0, %s176
      %s193 = sphi 0, %s177
      %s201 = sphi 0, %s203
      %s204 = sphi 0, %s201
      %s205 = sphi 0, %s204
      %s221 = sphi 0, %s205
    $region4: #{self_attn.3} parent=1 // loop_header_branch
      %23 = sbr.rel (%p21) target = $region8
    $region5: #{self_attn.3} parent=1 // loop_body
      %s25 = ssub.s32 %s20, 1
      %s26 = ssub.s32 %s20, 2
      %s33 = sadd.s32 1, %s28
      %p34 = scmp.ge.s32.totalorder %s33, 2
      %s35 = scalar_select %p34, 0, %s33
      %s36 = sadd.s32 1, %s27
      %s37 = scalar_select %p34, %s36, %s27
      %p38 = scmp.ge.s32.totalorder %s37, 2
      %s39 = scalar_select %p38, 0, %s37
      %s40 = ssub.s32 %s27, %s39
      %s41 = ssub.s32 %s28, %s35
      %s42 = sor.u32 %s40, %s41
      %p43 = scmp.eq.s32.totalorder %s42, 0
      %s45 = sadd.s32 %s44, 1
      %s46 = scalar_select %p43, %s44, %s45
      %p49 = pneg %p43
      %p50 = scmp.eq.s32.totalorder %s20, 3
      %p51 = por %p49, %p50
      %p52 = scmp.ne.s32.totalorder %s44, %s47
      %p53 = scmp.eq.s32.totalorder %s20, 0
      %p54 = por %p52, %p53
      %p55 = scmp.ne.s32.totalorder %s44, %s47
      %p56 = scmp.eq.s32.totalorder %s25, 3
      %p57 = por %p55, %p56
      %p58 = scmp.ne.s32.totalorder %s47, %s48
      %p59 = scmp.eq.s32.totalorder %s25, 0
      %p60 = por %p58, %p59
      %p61 = scmp.ne.s32.totalorder %s47, %s48
      %p62 = scmp.eq.s32.totalorder %s26, 3
      %p63 = por %p61, %p62
      %p65 = scmp.ne.s32.totalorder %s48, %s64
      %p66 = scmp.eq.s32.totalorder %s26, 0
      %p67 = por %p65, %p66
      %s68 = ssub.s32 %s27, %s39
      %p69 = scmp.eq.s32.totalorder %s68, 0
      %s71 = sadd.s32 %s70, 1
      %s72 = scalar_select %p69, %s70, %s71
      %p75 = pneg %p69
      %p76 = scmp.eq.s32.totalorder %s20, 3
      %p77 = por %p75, %p76
      %p78 = scmp.ne.s32.totalorder %s70, %s73
      %p79 = scmp.eq.s32.totalorder %s20, 0
      %p80 = por %p78, %p79
      %p81 = scmp.ne.s32.totalorder %s70, %s73
      %p82 = scmp.eq.s32.totalorder %s25, 3
      %p83 = por %p81, %p82
      %p84 = scmp.ne.s32.totalorder %s73, %s74
      %p85 = scmp.eq.s32.totalorder %s25, 0
      %p86 = por %p84, %p85
      %p87 = scmp.ne.s32.totalorder %s73, %s74
      %p88 = scmp.eq.s32.totalorder %s26, 3
      %p89 = por %p87, %p88
      %p91 = scmp.ne.s32.totalorder %s74, %s90
      %p92 = scmp.eq.s32.totalorder %s26, 0
      %p93 = por %p91, %p92
      %s94 = ssub.s32 %s27, %s39
      %p95 = scmp.eq.s32.totalorder %s94, 0
      %s97 = sadd.s32 %s96, 1
      %s98 = scalar_select %p95, %s96, %s97
      %p101 = pneg %p95
      %p102 = scmp.eq.s32.totalorder %s20, 3
      %p103 = por %p101, %p102
      %p104 = scmp.ne.s32.totalorder %s96, %s99
      %p105 = scmp.eq.s32.totalorder %s20, 0
      %p106 = por %p104, %p105
      %p107 = scmp.ne.s32.totalorder %s96, %s99
      %p108 = scmp.eq.s32.totalorder %s25, 3
      %p109 = por %p107, %p108
      %p110 = scmp.ne.s32.totalorder %s99, %s100
      %p111 = scmp.eq.s32.totalorder %s25, 0
      %p112 = por %p110, %p111
      %p113 = scmp.ne.s32.totalorder %s99, %s100
      %p114 = scmp.eq.s32.totalorder %s26, 3
      %p115 = por %p113, %p114
      %p117 = scmp.ne.s32.totalorder %s100, %s116
      %p118 = scmp.eq.s32.totalorder %s26, 0
      %p119 = por %p117, %p118
      %s120 = ssub.s32 %s27, %s39
      %s121 = ssub.s32 %s28, %s35
      %s122 = sor.u32 %s120, %s121
      %p123 = scmp.eq.s32.totalorder %s122, 0
      %s125 = sadd.s32 %s124, 1
      %s126 = scalar_select %p123, %s124, %s125
      %p129 = pneg %p123
      %p130 = scmp.eq.s32.totalorder %s20, 3
      %p131 = por %p129, %p130
      %p132 = scmp.ne.s32.totalorder %s124, %s127
      %p133 = scmp.eq.s32.totalorder %s20, 0
      %p134 = por %p132, %p133
      %p135 = scmp.ne.s32.totalorder %s124, %s127
      %p136 = scmp.eq.s32.totalorder %s25, 3
      %p137 = por %p135, %p136
      %p138 = scmp.ne.s32.totalorder %s127, %s128
      %p139 = scmp.eq.s32.totalorder %s25, 0
      %p140 = por %p138, %p139
      %p141 = scmp.ne.s32.totalorder %s127, %s128
      %p142 = scmp.eq.s32.totalorder %s26, 3
      %p143 = por %p141, %p142
      %p145 = scmp.ne.s32.totalorder %s128, %s144
      %p146 = scmp.eq.s32.totalorder %s26, 0
      %p147 = por %p145, %p146
      %s149 = sadd.s32 %s148, 1
      %p152 = scmp.eq.s32.totalorder %s20, 3
      %p153 = scmp.ne.s32.totalorder %s148, %s150
      %p154 = scmp.eq.s32.totalorder %s20, 0
      %p155 = por %p153, %p154
      %p156 = scmp.ne.s32.totalorder %s148, %s150
      %p157 = scmp.eq.s32.totalorder %s25, 3
      %p158 = por %p156, %p157
      %p159 = scmp.ne.s32.totalorder %s150, %s151
      %p160 = scmp.eq.s32.totalorder %s25, 0
      %p161 = por %p159, %p160
      %p162 = scmp.ne.s32.totalorder %s150, %s151
      %p163 = scmp.eq.s32.totalorder %s26, 3
      %p164 = por %p162, %p163
      %p166 = scmp.ne.s32.totalorder %s151, %s165
      %p167 = scmp.eq.s32.totalorder %s26, 0
      %p168 = por %p166, %p167
      %s169 = ssub.s32 %s27, %s39
      %s170 = ssub.s32 %s28, %s35
      %s171 = sor.u32 %s169, %s170
      %p172 = scmp.eq.s32.totalorder %s171, 0
      %s174 = sadd.s32 %s173, 1
      %s175 = scalar_select %p172, %s173, %s174
      %p178 = pneg %p172
      %p179 = scmp.eq.s32.totalorder %s20, 3
      %p180 = por %p178, %p179
      %p181 = scmp.ne.s32.totalorder %s173, %s176
      %p182 = scmp.eq.s32.totalorder %s20, 0
      %p183 = por %p181, %p182
      %p184 = scmp.ne.s32.totalorder %s173, %s176
      %p185 = scmp.eq.s32.totalorder %s25, 3
      %p186 = por %p184, %p185
      %p187 = scmp.ne.s32.totalorder %s176, %s177
      %p188 = scmp.eq.s32.totalorder %s25, 0
      %p189 = por %p187, %p188
      %p190 = scmp.ne.s32.totalorder %s176, %s177
      %p191 = scmp.eq.s32.totalorder %s26, 3
      %p192 = por %p190, %p191
      %p194 = scmp.ne.s32.totalorder %s177, %s193
      %p195 = scmp.eq.s32.totalorder %s26, 0
      %p196 = por %p194, %p195
      %s197 = ssub.s32 %s27, %s39
      %s198 = ssub.s32 %s28, %s35
      %s199 = sor.u32 %s197, %s198
      %p200 = scmp.eq.s32.totalorder %s199, 0
      %s202 = sadd.s32 %s201, 1
      %s203 = scalar_select %p200, %s201, %s202
      %p206 = pneg %p200
      %p207 = scmp.eq.s32.totalorder %s20, 3
      %p208 = por %p206, %p207
      %p209 = scmp.ne.s32.totalorder %s201, %s204
      %p210 = scmp.eq.s32.totalorder %s20, 0
      %p211 = por %p209, %p210
      %p212 = scmp.ne.s32.totalorder %s201, %s204
      %p213 = scmp.eq.s32.totalorder %s25, 3
      %p214 = por %p212, %p213
      %p215 = scmp.ne.s32.totalorder %s204, %s205
      %p216 = scmp.eq.s32.totalorder %s25, 0
      %p217 = por %p215, %p216
      %p218 = scmp.ne.s32.totalorder %s204, %s205
      %p219 = scmp.eq.s32.totalorder %s26, 3
      %p220 = por %p218, %p219
      %p222 = scmp.ne.s32.totalorder %s205, %s221
      %p223 = scmp.eq.s32.totalorder %s26, 0
      %p224 = por %p222, %p223
      %p225 = scmp.le.s32.totalorder 1, %s20
      %p226 = scmp.lt.s32.totalorder %s20, 5
      %p227 = pnand %p225, %p226
      %p228 = pneg %p227
      // Predicated region
      $region9: #{self_attn.3} parent=5 // pred_check
        _
      $region10: #{self_attn.3} parent=5 // pred_check_branch
        %230 = sbr.rel (%p227) target = $region12
      $region11: #{self_attn.3} parent=5 // pred_region
        %s231 = ssub.s32 %s20, 1
        // Predicated region
        $region13: #{self_attn.3} parent=11 // pred_check
          %p232 = pneg %p161
        $region14: #{self_attn.3} parent=11 // pred_check_branch
          %234 = sbr.rel (%p232) target = $region16
        $region15: #{self_attn.3} parent=11 // pred_region
          _
        $region16: #{self_attn.3} parent=11 // pred_fallthru
          _
      $region12: #{self_attn.3} parent=5 // pred_fallthru
        _
      %p235 = scmp.lt.s32.totalorder %s20, 4
      // Predicated region
      $region17: #{self_attn.3} parent=5 // pred_check
        %p236 = pneg %p235
      $region18: #{self_attn.3} parent=5 // pred_check_branch
        %238 = sbr.rel (%p236) target = $region20
      $region19: #{self_attn.3} parent=5 // pred_region
        // Predicated region
        $region21: #{self_attn.3} parent=19 // pred_check
          %p239 = pneg %p54
        $region22: #{self_attn.3} parent=19 // pred_check_branch
          %241 = sbr.rel (%p239) target = $region24
        $region23: #{self_attn.3} parent=19 // pred_region
          %s242 = smul.u32 16, %s28
          %p243 = scmp.lt.s32.totalorder %s27, 1
          %s244 = scalar_select %p243, %s27, 1
          %p245 = scmp.lt.s32.totalorder %s242, 31
          %s246 = scalar_select %p245, %s242, 31
          %s247 = smul.addr %s244, 32
          %s248 = sadd.s32 %s246, %s247
          %s249 = smul.addr %s248, 4
          %s250 = scalar_lea.vmem %s0, %s249
          %s251 = smul.u32 16, %s28
        $region24: #{self_attn.3} parent=19 // pred_fallthru
          _
        // Predicated region
        $region25: #{self_attn.3} parent=19 // pred_check
          %p252 = pneg %p80
        $region26: #{self_attn.3} parent=19 // pred_check_branch
          %254 = sbr.rel (%p252) target = $region28
        $region27: #{self_attn.3} parent=19 // pred_region
          %p255 = scmp.lt.s32.totalorder %s27, 1
          %s256 = scalar_select %p255, %s27, 1
          %s257 = smul.addr %s256, 32
          %s258 = smul.addr %s257, 4
          %s259 = scalar_lea.vmem %s1, %s258
        $region28: #{self_attn.3} parent=19 // pred_fallthru
          _
        // Predicated region
        $region29: #{self_attn.3} parent=19 // pred_check
          %p260 = pneg %p106
        $region30: #{self_attn.3} parent=19 // pred_check_branch
          %262 = sbr.rel (%p260) target = $region32
        $region31: #{self_attn.3} parent=19 // pred_region
          %p263 = scmp.lt.s32.totalorder %s27, 1
          %s264 = scalar_select %p263, %s27, 1
          %s265 = smul.addr %s264, 32
          %s266 = smul.addr %s265, 4
          %s267 = scalar_lea.vmem %s2, %s266
        $region32: #{self_attn.3} parent=19 // pred_fallthru
          _
        // Predicated region
        $region33: #{self_attn.3} parent=19 // pred_check
          %p268 = pneg %p134
        $region34: #{self_attn.3} parent=19 // pred_check_branch
          %270 = sbr.rel (%p268) target = $region36
        $region35: #{self_attn.3} parent=19 // pred_region
          %s271 = smul.u32 16, %s28
          %p272 = scmp.lt.s32.totalorder %s27, 1
          %s273 = scalar_select %p272, %s27, 1
          %p274 = scmp.lt.s32.totalorder %s271, 31
          %s275 = scalar_select %p274, %s271, 31
          %s276 = smul.addr %s273, 32
          %s277 = sadd.s32 %s275, %s276
          %s278 = smul.addr %s277, 8
          %s279 = scalar_lea.vmem %s3, %s278
          %s280 = smul.u32 16, %s28
        $region36: #{self_attn.3} parent=19 // pred_fallthru
          _
      $region20: #{self_attn.3} parent=5 // pred_fallthru
        _
      %p281 = scmp.le.s32.totalorder 1, %s20
      %p282 = scmp.lt.s32.totalorder %s20, 5
      %p283 = pnand %p281, %p282
      %p284 = pneg %p283
      // Predicated region
      $region37: #{self_attn.3} parent=5 // pred_check
        _
      $region38: #{self_attn.3} parent=5 // pred_check_branch
        %286 = sbr.rel (%p283) target = $region40
      $region39: #{self_attn.3} parent=5 // pred_region
        %s287 = ssub.s32 %s20, 1
        %s288 = smul.u32 16, %s30
        %p289 = scmp.lt.s32.totalorder %s29, 1
        %s290 = scalar_select %p289, %s29, 1
        %p291 = scmp.lt.s32.totalorder %s288, 31
        %s292 = scalar_select %p291, %s288, 31
        %s293 = smul.addr %s290, 32
        %s294 = sadd.s32 %s292, %s293
        %s295 = smul.addr %s294, 4
        %s296 = scalar_lea.vmem %s0, %s295
        %p297 = pneg %p60
        %p298 = pneg %p57
        %p299 = scmp.lt.s32.totalorder %s29, 1
        %s300 = scalar_select %p299, %s29, 1
        %s301 = smul.addr %s300, 32
        %s302 = smul.addr %s301, 4
        %s303 = scalar_lea.vmem %s1, %s302
        %p304 = pneg %p86
        %p305 = pneg %p83
        %p306 = scmp.lt.s32.totalorder %s29, 1
        %s307 = scalar_select %p306, %s29, 1
        %s308 = smul.addr %s307, 32
        %s309 = smul.addr %s308, 4
        %s310 = scalar_lea.vmem %s2, %s309
        %p311 = pneg %p112
        %p312 = pneg %p109
        %s313 = smul.u32 16, %s30
        %p314 = scmp.lt.s32.totalorder %s29, 1
        %s315 = scalar_select %p314, %s29, 1
        %p316 = scmp.lt.s32.totalorder %s313, 31
        %s317 = scalar_select %p316, %s313, 31
        %s318 = smul.addr %s315, 32
        %s319 = sadd.s32 %s317, %s318
        %s320 = smul.addr %s319, 8
        %s321 = scalar_lea.vmem %s3, %s320
        %p322 = pneg %p140
        %p323 = pneg %p137
        %p324 = pneg %p161
        %p325 = pneg %p158
        %p326 = pneg %p189
        %p327 = pneg %p186
        %s328 = sand.u32 %s176, 1
        %s329 = scalar_lea.sflag [#allocation4], %s328
        %s330 = sand.u32 %s176, 1
        %s331 = smul.addr %s330, 128
        %s332 = scalar_lea.vmem [#allocation3], %s331
        %p333 = pneg %p217
        %p334 = pneg %p214
        %s335 = sand.u32 %s204, 1
        %s336 = scalar_lea.sflag [#allocation6], %s335
        %s337 = sand.u32 %s204, 1
        %s338 = smul.addr %s337, 256
        %s339 = scalar_lea.vmem [#allocation5], %s338
        %s340 = smul.u32 16, %s30
        %p341 = scmp.lt.s32.totalorder %s29, 1
        %s342 = scalar_select %p341, %s29, 1
        %p343 = scmp.lt.s32.totalorder %s340, 31
        %s344 = scalar_select %p343, %s340, 31
        %s345 = smul.addr %s342, 32
        %s346 = sadd.s32 %s344, %s345
        %s347 = smul.addr %s346, 4
        %s348 = scalar_lea.vmem %s0, %s347
        %s349 = smul.u32 16, %s30
        %p350 = scmp.lt.s32.totalorder %s29, 1
        %s351 = scalar_select %p350, %s29, 1
        %s352 = smul.addr %s351, 32
        %s353 = smul.addr %s352, 4
        %s354 = scalar_lea.vmem %s1, %s353
        %p355 = scmp.lt.s32.totalorder %s29, 1
        %s356 = scalar_select %p355, %s29, 1
        %s357 = smul.addr %s356, 32
        %s358 = smul.addr %s357, 4
        %s359 = scalar_lea.vmem %s2, %s358
        %s360 = smul.u32 16, %s30
        %p361 = scmp.lt.s32.totalorder %s29, 1
        %s362 = scalar_select %p361, %s29, 1
        %p363 = scmp.lt.s32.totalorder %s360, 31
        %s364 = scalar_select %p363, %s360, 31
        %s365 = smul.addr %s362, 32
        %s366 = sadd.s32 %s364, %s365
        %s367 = smul.addr %s366, 8
        %s368 = scalar_lea.vmem %s3, %s367
        %s369 = smul.u32 16, %s30
        %s370 = smul.u32 16, %s30
        %s371 = smul.u32 16, %s30
        %v372 = vld [vmem:[%s348] sm:$0xf]
        %v373 = vld [vmem:[%s348 + $0x4] sm:$0xf]
        %v374 = vld [vmem:[%s348 + $0x8] sm:$0xf]
        %v375 = vld [vmem:[%s348 + $0xc] sm:$0xf]
        %v376 = vld [vmem:[%s348 + $0x10] sm:$0xf]
        %v377 = vld [vmem:[%s348 + $0x14] sm:$0xf]
        %v378 = vld [vmem:[%s348 + $0x18] sm:$0xf]
        %v379 = vld [vmem:[%s348 + $0x1c] sm:$0xf]
        %v380 = vld [vmem:[%s348 + $0x20] sm:$0xf]
        %v381 = vld [vmem:[%s348 + $0x24] sm:$0xf]
        %v382 = vld [vmem:[%s348 + $0x28] sm:$0xf]
        %v383 = vld [vmem:[%s348 + $0x2c] sm:$0xf]
        %v384 = vld [vmem:[%s348 + $0x30] sm:$0xf]
        %v385 = vld [vmem:[%s348 + $0x34] sm:$0xf]
        %v386 = vld [vmem:[%s348 + $0x38] sm:$0xf]
        %v387 = vld [vmem:[%s348 + $0x3c] sm:$0xf]
        %v388 = vld [vmem:[%s354] sm:$0xf]
        %v389 = vld [vmem:[%s354 + $0x4] sm:$0xf]
        %v390 = vld [vmem:[%s354 + $0x8] sm:$0xf]
        %v391 = vld [vmem:[%s354 + $0xc] sm:$0xf]
        %v392 = vld [vmem:[%s354 + $0x10] sm:$0xf]
        %v393 = vld [vmem:[%s354 + $0x14] sm:$0xf]
        %v394 = vld [vmem:[%s354 + $0x18] sm:$0xf]
        %v395 = vld [vmem:[%s354 + $0x1c] sm:$0xf]
        %v396 = vld [vmem:[%s354 + $0x20] sm:$0xf]
        %v397 = vld [vmem:[%s354 + $0x24] sm:$0xf]
        %v398 = vld [vmem:[%s354 + $0x28] sm:$0xf]
        %v399 = vld [vmem:[%s354 + $0x2c] sm:$0xf]
        %v400 = vld [vmem:[%s354 + $0x30] sm:$0xf]
        %v401 = vld [vmem:[%s354 + $0x34] sm:$0xf]
        %v402 = vld [vmem:[%s354 + $0x38] sm:$0xf]
        %v403 = vld [vmem:[%s354 + $0x3c] sm:$0xf]
        %v404 = vld [vmem:[%s354 + $0x40] sm:$0xf]
        %v405 = vld [vmem:[%s354 + $0x44] sm:$0xf]
        %v406 = vld [vmem:[%s354 + $0x48] sm:$0xf]
        %v407 = vld [vmem:[%s354 + $0x4c] sm:$0xf]
        %v408 = vld [vmem:[%s354 + $0x50] sm:$0xf]
        %v409 = vld [vmem:[%s354 + $0x54] sm:$0xf]
        %v410 = vld [vmem:[%s354 + $0x58] sm:$0xf]
        %v411 = vld [vmem:[%s354 + $0x5c] sm:$0xf]
        %v412 = vld [vmem:[%s354 + $0x60] sm:$0xf]
        %v413 = vld [vmem:[%s354 + $0x64] sm:$0xf]
        %v414 = vld [vmem:[%s354 + $0x68] sm:$0xf]
        %v415 = vld [vmem:[%s354 + $0x6c] sm:$0xf]
        %v416 = vld [vmem:[%s354 + $0x70] sm:$0xf]
        %v417 = vld [vmem:[%s354 + $0x74] sm:$0xf]
        %v418 = vld [vmem:[%s354 + $0x78] sm:$0xf]
        %v419 = vld [vmem:[%s354 + $0x7c] sm:$0xf]
        %v420 = vld [vmem:[%s359] sm:$0xf]
        %v421 = vld [vmem:[%s359 + $0x4] sm:$0xf]
        %v422 = vld [vmem:[%s359 + $0x8] sm:$0xf]
        %v423 = vld [vmem:[%s359 + $0xc] sm:$0xf]
        %v424 = vld [vmem:[%s359 + $0x10] sm:$0xf]
        %v425 = vld [vmem:[%s359 + $0x14] sm:$0xf]
        %v426 = vld [vmem:[%s359 + $0x18] sm:$0xf]
        %v427 = vld [vmem:[%s359 + $0x1c] sm:$0xf]
        %v428 = vld [vmem:[%s359 + $0x20] sm:$0xf]
        %v429 = vld [vmem:[%s359 + $0x24] sm:$0xf]
        %v430 = vld [vmem:[%s359 + $0x28] sm:$0xf]
        %v431 = vld [vmem:[%s359 + $0x2c] sm:$0xf]
        %v432 = vld [vmem:[%s359 + $0x30] sm:$0xf]
        %v433 = vld [vmem:[%s359 + $0x34] sm:$0xf]
        %v434 = vld [vmem:[%s359 + $0x38] sm:$0xf]
        %v435 = vld [vmem:[%s359 + $0x3c] sm:$0xf]
        %v436 = vld [vmem:[%s359 + $0x40] sm:$0xf]
        %v437 = vld [vmem:[%s359 + $0x44] sm:$0xf]
        %v438 = vld [vmem:[%s359 + $0x48] sm:$0xf]
        %v439 = vld [vmem:[%s359 + $0x4c] sm:$0xf]
        %v440 = vld [vmem:[%s359 + $0x50] sm:$0xf]
        %v441 = vld [vmem:[%s359 + $0x54] sm:$0xf]
        %v442 = vld [vmem:[%s359 + $0x58] sm:$0xf]
        %v443 = vld [vmem:[%s359 + $0x5c] sm:$0xf]
        %v444 = vld [vmem:[%s359 + $0x60] sm:$0xf]
        %v445 = vld [vmem:[%s359 + $0x64] sm:$0xf]
        %v446 = vld [vmem:[%s359 + $0x68] sm:$0xf]
        %v447 = vld [vmem:[%s359 + $0x6c] sm:$0xf]
        %v448 = vld [vmem:[%s359 + $0x70] sm:$0xf]
        %v449 = vld [vmem:[%s359 + $0x74] sm:$0xf]
        %v450 = vld [vmem:[%s359 + $0x78] sm:$0xf]
        %v451 = vld [vmem:[%s359 + $0x7c] sm:$0xf]
        %v468 = vunpack.c.l.b16 %v372
        %v469 = vunpack.c.l.b16 %v373
        %v470 = vunpack.c.l.b16 %v374
        %v471 = vunpack.c.l.b16 %v375
        %v472 = vunpack.c.l.b16 %v376
        %v473 = vunpack.c.l.b16 %v377
        %v474 = vunpack.c.l.b16 %v378
        %v475 = vunpack.c.l.b16 %v379
        %v476 = vunpack.c.l.b16 %v380
        %v477 = vunpack.c.l.b16 %v381
        %v478 = vunpack.c.l.b16 %v382
        %v479 = vunpack.c.l.b16 %v383
        %v480 = vunpack.c.l.b16 %v384
        %v481 = vunpack.c.l.b16 %v385
        %v482 = vunpack.c.l.b16 %v386
        %v483 = vunpack.c.l.b16 %v387
        %v484 = vpack.c.b16 %v469, %v468
        %v485 = vpack.c.b16 %v471, %v470
        %v486 = vpack.c.b16 %v473, %v472
        %v487 = vpack.c.b16 %v475, %v474
        %v488 = vpack.c.b16 %v477, %v476
        %v489 = vpack.c.b16 %v479, %v478
        %v490 = vpack.c.b16 %v481, %v480
        %v491 = vpack.c.b16 %v483, %v482
        %v532 = vunpack.c.l.b16 %v388
        %v533 = vunpack.c.l.b16 %v389
        %v534 = vunpack.c.l.b16 %v390
        %v535 = vunpack.c.l.b16 %v391
        %v536 = vunpack.c.l.b16 %v392
        %v537 = vunpack.c.l.b16 %v393
        %v538 = vunpack.c.l.b16 %v394
        %v539 = vunpack.c.l.b16 %v395
        %v540 = vunpack.c.l.b16 %v396
        %v541 = vunpack.c.l.b16 %v397
        %v542 = vunpack.c.l.b16 %v398
        %v543 = vunpack.c.l.b16 %v399
        %v544 = vunpack.c.l.b16 %v400
        %v545 = vunpack.c.l.b16 %v401
        %v546 = vunpack.c.l.b16 %v402
        %v547 = vunpack.c.l.b16 %v403
        %v548 = vunpack.c.l.b16 %v404
        %v549 = vunpack.c.l.b16 %v405
        %v550 = vunpack.c.l.b16 %v406
        %v551 = vunpack.c.l.b16 %v407
        %v552 = vunpack.c.l.b16 %v408
        %v553 = vunpack.c.l.b16 %v409
        %v554 = vunpack.c.l.b16 %v410
        %v555 = vunpack.c.l.b16 %v411
        %v556 = vunpack.c.l.b16 %v412
        %v557 = vunpack.c.l.b16 %v413
        %v558 = vunpack.c.l.b16 %v414
        %v559 = vunpack.c.l.b16 %v415
        %v560 = vunpack.c.l.b16 %v416
        %v561 = vunpack.c.l.b16 %v417
        %v562 = vunpack.c.l.b16 %v418
        %v563 = vunpack.c.l.b16 %v419
        %v564 = vpack.c.b16 %v533, %v532
        %v565 = vpack.c.b16 %v535, %v534
        %v566 = vpack.c.b16 %v537, %v536
        %v567 = vpack.c.b16 %v539, %v538
        %v568 = vpack.c.b16 %v541, %v540
        %v569 = vpack.c.b16 %v543, %v542
        %v570 = vpack.c.b16 %v545, %v544
        %v571 = vpack.c.b16 %v547, %v546
        %v572 = vpack.c.b16 %v549, %v548
        %v573 = vpack.c.b16 %v551, %v550
        %v574 = vpack.c.b16 %v553, %v552
        %v575 = vpack.c.b16 %v555, %v554
        %v576 = vpack.c.b16 %v557, %v556
        %v577 = vpack.c.b16 %v559, %v558
        %v578 = vpack.c.b16 %v561, %v560
        %v579 = vpack.c.b16 %v563, %v562
        %596 = vmatpush.bf16.xpose.msra.mxu0 %v571
        %597 = vmatpush.bf16.xpose.msra.mxu0 %v570
        %598 = vmatpush.bf16.xpose.msra.mxu0 %v569
        %599 = vmatpush.bf16.xpose.msra.mxu0 %v568
        %600 = vmatpush.bf16.xpose.msra.mxu0 %v567
        %601 = vmatpush.bf16.xpose.msra.mxu0 %v566
        %602 = vmatpush.bf16.xpose.msra.mxu0 %v565
        %603 = vmatpush.bf16.xpose.msra.mxu0 %v564
        %604 = vmatmul.bf16.gmra.mxu0 %v484
        %v605 = vpop.f32.mrf.mxu0
        %v606 = vadd.f32 0.0, %v605
        %v607 = vpop.f32.mrf.mxu0
        %v608 = vadd.f32 0.0, %v607
        %609 = vmatmul.bf16.gmra.mxu0 %v485
        %v610 = vpop.f32.mrf.mxu0
        %v611 = vadd.f32 0.0, %v610
        %v612 = vpop.f32.mrf.mxu0
        %v613 = vadd.f32 0.0, %v612
        %614 = vmatmul.bf16.gmra.mxu0 %v486
        %v615 = vpop.f32.mrf.mxu0
        %v616 = vadd.f32 0.0, %v615
        %v617 = vpop.f32.mrf.mxu0
        %v618 = vadd.f32 0.0, %v617
        %619 = vmatmul.bf16.gmra.mxu0 %v487
        %v620 = vpop.f32.mrf.mxu0
        %v621 = vadd.f32 0.0, %v620
        %v622 = vpop.f32.mrf.mxu0
        %v623 = vadd.f32 0.0, %v622
        %624 = vmatmul.bf16.gmra.mxu0 %v488
        %v625 = vpop.f32.mrf.mxu0
        %v626 = vadd.f32 0.0, %v625
        %v627 = vpop.f32.mrf.mxu0
        %v628 = vadd.f32 0.0, %v627
        %629 = vmatmul.bf16.gmra.mxu0 %v489
        %v630 = vpop.f32.mrf.mxu0
        %v631 = vadd.f32 0.0, %v630
        %v632 = vpop.f32.mrf.mxu0
        %v633 = vadd.f32 0.0, %v632
        %634 = vmatmul.bf16.gmra.mxu0 %v490
        %v635 = vpop.f32.mrf.mxu0
        %v636 = vadd.f32 0.0, %v635
        %v637 = vpop.f32.mrf.mxu0
        %v638 = vadd.f32 0.0, %v637
        %639 = vmatmul.bf16.gmra.mxu0 %v491
        %v640 = vpop.f32.mrf.mxu0
        %v641 = vadd.f32 0.0, %v640
        %v642 = vpop.f32.mrf.mxu0
        %v643 = vadd.f32 0.0, %v642
        %644 = vdwg.mxu0
        %645 = vmatpush.bf16.xpose.msra.mxu0 %v579
        %646 = vmatpush.bf16.xpose.msra.mxu0 %v578
        %647 = vmatpush.bf16.xpose.msra.mxu0 %v577
        %648 = vmatpush.bf16.xpose.msra.mxu0 %v576
        %649 = vmatpush.bf16.xpose.msra.mxu0 %v575
        %650 = vmatpush.bf16.xpose.msra.mxu0 %v574
        %651 = vmatpush.bf16.xpose.msra.mxu0 %v573
        %652 = vmatpush.bf16.xpose.msra.mxu0 %v572
        %653 = vmatmul.bf16.gmra.mxu0 %v484
        %v654 = vpop.f32.mrf.mxu0
        %v655 = vadd.f32 0.0, %v654
        %v656 = vpop.f32.mrf.mxu0
        %v657 = vadd.f32 0.0, %v656
        %658 = vmatmul.bf16.gmra.mxu0 %v485
        %v659 = vpop.f32.mrf.mxu0
        %v660 = vadd.f32 0.0, %v659
        %v661 = vpop.f32.mrf.mxu0
        %v662 = vadd.f32 0.0, %v661
        %663 = vmatmul.bf16.gmra.mxu0 %v486
        %v664 = vpop.f32.mrf.mxu0
        %v665 = vadd.f32 0.0, %v664
        %v666 = vpop.f32.mrf.mxu0
        %v667 = vadd.f32 0.0, %v666
        %668 = vmatmul.bf16.gmra.mxu0 %v487
        %v669 = vpop.f32.mrf.mxu0
        %v670 = vadd.f32 0.0, %v669
        %v671 = vpop.f32.mrf.mxu0
        %v672 = vadd.f32 0.0, %v671
        %673 = vmatmul.bf16.gmra.mxu0 %v488
        %v674 = vpop.f32.mrf.mxu0
        %v675 = vadd.f32 0.0, %v674
        %v676 = vpop.f32.mrf.mxu0
        %v677 = vadd.f32 0.0, %v676
        %678 = vmatmul.bf16.gmra.mxu0 %v489
        %v679 = vpop.f32.mrf.mxu0
        %v680 = vadd.f32 0.0, %v679
        %v681 = vpop.f32.mrf.mxu0
        %v682 = vadd.f32 0.0, %v681
        %683 = vmatmul.bf16.gmra.mxu0 %v490
        %v684 = vpop.f32.mrf.mxu0
        %v685 = vadd.f32 0.0, %v684
        %v686 = vpop.f32.mrf.mxu0
        %v687 = vadd.f32 0.0, %v686
        %688 = vmatmul.bf16.gmra.mxu0 %v491
        %v689 = vpop.f32.mrf.mxu0
        %v690 = vadd.f32 0.0, %v689
        %v691 = vpop.f32.mrf.mxu0
        %v692 = vadd.f32 0.0, %v691
        %693 = vdwg.mxu0
        %v694 = vmax.f32 %v606, %v655
        %695 = vmax.xlane.f32.xlu0 %v694
        %v696 = vpop.xlane.xlu0 %695
        %v697 = vmax.f32 %v608, %v657
        %698 = vmax.xlane.f32.xlu0 %v697
        %v699 = vpop.xlane.xlu0 %698
        %v700 = vmax.f32 %v611, %v660
        %701 = vmax.xlane.f32.xlu0 %v700
        %v702 = vpop.xlane.xlu0 %701
        %v703 = vmax.f32 %v613, %v662
        %704 = vmax.xlane.f32.xlu0 %v703
        %v705 = vpop.xlane.xlu0 %704
        %v706 = vmax.f32 %v616, %v665
        %707 = vmax.xlane.f32.xlu0 %v706
        %v708 = vpop.xlane.xlu0 %707
        %v709 = vmax.f32 %v618, %v667
        %710 = vmax.xlane.f32.xlu0 %v709
        %v711 = vpop.xlane.xlu0 %710
        %v712 = vmax.f32 %v621, %v670
        %713 = vmax.xlane.f32.xlu0 %v712
        %v714 = vpop.xlane.xlu0 %713
        %v715 = vmax.f32 %v623, %v672
        %716 = vmax.xlane.f32.xlu0 %v715
        %v717 = vpop.xlane.xlu0 %716
        %v718 = vmax.f32 %v626, %v675
        %719 = vmax.xlane.f32.xlu0 %v718
        %v720 = vpop.xlane.xlu0 %719
        %v721 = vmax.f32 %v628, %v677
        %722 = vmax.xlane.f32.xlu0 %v721
        %v723 = vpop.xlane.xlu0 %722
        %v724 = vmax.f32 %v631, %v680
        %725 = vmax.xlane.f32.xlu0 %v724
        %v726 = vpop.xlane.xlu0 %725
        %v727 = vmax.f32 %v633, %v682
        %728 = vmax.xlane.f32.xlu0 %v727
        %v729 = vpop.xlane.xlu0 %728
        %v730 = vmax.f32 %v636, %v685
        %731 = vmax.xlane.f32.xlu0 %v730
        %v732 = vpop.xlane.xlu0 %731
        %v733 = vmax.f32 %v638, %v687
        %734 = vmax.xlane.f32.xlu0 %v733
        %v735 = vpop.xlane.xlu0 %734
        %v736 = vmax.f32 %v641, %v690
        %737 = vmax.xlane.f32.xlu0 %v736
        %v738 = vpop.xlane.xlu0 %737
        %v739 = vmax.f32 %v643, %v692
        %740 = vmax.xlane.f32.xlu0 %v739
        %v741 = vpop.xlane.xlu0 %740
        %v742 = vsub.f32 %v606, %v696
        %v743 = vsub.f32 %v655, %v696
        %v744 = vsub.f32 %v608, %v699
        %v745 = vsub.f32 %v657, %v699
        %v746 = vsub.f32 %v611, %v702
        %v747 = vsub.f32 %v660, %v702
        %v748 = vsub.f32 %v613, %v705
        %v749 = vsub.f32 %v662, %v705
        %v750 = vsub.f32 %v616, %v708
        %v751 = vsub.f32 %v665, %v708
        %v752 = vsub.f32 %v618, %v711
        %v753 = vsub.f32 %v667, %v711
        %v754 = vsub.f32 %v621, %v714
        %v755 = vsub.f32 %v670, %v714
        %v756 = vsub.f32 %v623, %v717
        %v757 = vsub.f32 %v672, %v717
        %v758 = vsub.f32 %v626, %v720
        %v759 = vsub.f32 %v675, %v720
        %v760 = vsub.f32 %v628, %v723
        %v761 = vsub.f32 %v677, %v723
        %v762 = vsub.f32 %v631, %v726
        %v763 = vsub.f32 %v680, %v726
        %v764 = vsub.f32 %v633, %v729
        %v765 = vsub.f32 %v682, %v729
        %v766 = vsub.f32 %v636, %v732
        %v767 = vsub.f32 %v685, %v732
        %v768 = vsub.f32 %v638, %v735
        %v769 = vsub.f32 %v687, %v735
        %v770 = vsub.f32 %v641, %v738
        %v771 = vsub.f32 %v690, %v738
        %v772 = vsub.f32 %v643, %v741
        %v773 = vsub.f32 %v692, %v741
        %v774 = vmul.f32 %v742, 1.442695
        %v775 = vpow.pop %v774
        %v776 = vmul.f32 %v743, 1.442695
        %v777 = vpow.pop %v776
        %v778 = vmul.f32 %v744, 1.442695
        %v779 = vpow.pop %v778
        %v780 = vmul.f32 %v745, 1.442695
        %v781 = vpow.pop %v780
        %v782 = vmul.f32 %v746, 1.442695
        %v783 = vpow.pop %v782
        %v784 = vmul.f32 %v747, 1.442695
        %v785 = vpow.pop %v784
        %v786 = vmul.f32 %v748, 1.442695
        %v787 = vpow.pop %v786
        %v788 = vmul.f32 %v749, 1.442695
        %v789 = vpow.pop %v788
        %v790 = vmul.f32 %v750, 1.442695
        %v791 = vpow.pop %v790
        %v792 = vmul.f32 %v751, 1.442695
        %v793 = vpow.pop %v792
        %v794 = vmul.f32 %v752, 1.442695
        %v795 = vpow.pop %v794
        %v796 = vmul.f32 %v753, 1.442695
        %v797 = vpow.pop %v796
        %v798 = vmul.f32 %v754, 1.442695
        %v799 = vpow.pop %v798
        %v800 = vmul.f32 %v755, 1.442695
        %v801 = vpow.pop %v800
        %v802 = vmul.f32 %v756, 1.442695
        %v803 = vpow.pop %v802
        %v804 = vmul.f32 %v757, 1.442695
        %v805 = vpow.pop %v804
        %v806 = vmul.f32 %v758, 1.442695
        %v807 = vpow.pop %v806
        %v808 = vmul.f32 %v759, 1.442695
        %v809 = vpow.pop %v808
        %v810 = vmul.f32 %v760, 1.442695
        %v811 = vpow.pop %v810
        %v812 = vmul.f32 %v761, 1.442695
        %v813 = vpow.pop %v812
        %v814 = vmul.f32 %v762, 1.442695
        %v815 = vpow.pop %v814
        %v816 = vmul.f32 %v763, 1.442695
        %v817 = vpow.pop %v816
        %v818 = vmul.f32 %v764, 1.442695
        %v819 = vpow.pop %v818
        %v820 = vmul.f32 %v765, 1.442695
        %v821 = vpow.pop %v820
        %v822 = vmul.f32 %v766, 1.442695
        %v823 = vpow.pop %v822
        %v824 = vmul.f32 %v767, 1.442695
        %v825 = vpow.pop %v824
        %v826 = vmul.f32 %v768, 1.442695
        %v827 = vpow.pop %v826
        %v828 = vmul.f32 %v769, 1.442695
        %v829 = vpow.pop %v828
        %v830 = vmul.f32 %v770, 1.442695
        %v831 = vpow.pop %v830
        %v832 = vmul.f32 %v771, 1.442695
        %v833 = vpow.pop %v832
        %v834 = vmul.f32 %v772, 1.442695
        %v835 = vpow.pop %v834
        %v836 = vmul.f32 %v773, 1.442695
        %v837 = vpow.pop %v836
        %v838 = vadd.f32 %v775, %v777
        %839 = vadd.xlane.f32.xlu0 %v838
        %v840 = vpop.xlane.xlu0 %839
        %v841 = vadd.f32 %v779, %v781
        %842 = vadd.xlane.f32.xlu0 %v841
        %v843 = vpop.xlane.xlu0 %842
        %v844 = vadd.f32 %v783, %v785
        %845 = vadd.xlane.f32.xlu0 %v844
        %v846 = vpop.xlane.xlu0 %845
        %v847 = vadd.f32 %v787, %v789
        %848 = vadd.xlane.f32.xlu0 %v847
        %v849 = vpop.xlane.xlu0 %848
        %v850 = vadd.f32 %v791, %v793
        %851 = vadd.xlane.f32.xlu0 %v850
        %v852 = vpop.xlane.xlu0 %851
        %v853 = vadd.f32 %v795, %v797
        %854 = vadd.xlane.f32.xlu0 %v853
        %v855 = vpop.xlane.xlu0 %854
        %v856 = vadd.f32 %v799, %v801
        %857 = vadd.xlane.f32.xlu0 %v856
        %v858 = vpop.xlane.xlu0 %857
        %v859 = vadd.f32 %v803, %v805
        %860 = vadd.xlane.f32.xlu0 %v859
        %v861 = vpop.xlane.xlu0 %860
        %v862 = vadd.f32 %v807, %v809
        %863 = vadd.xlane.f32.xlu0 %v862
        %v864 = vpop.xlane.xlu0 %863
        %v865 = vadd.f32 %v811, %v813
        %866 = vadd.xlane.f32.xlu0 %v865
        %v867 = vpop.xlane.xlu0 %866
        %v868 = vadd.f32 %v815, %v817
        %869 = vadd.xlane.f32.xlu0 %v868
        %v870 = vpop.xlane.xlu0 %869
        %v871 = vadd.f32 %v819, %v821
        %872 = vadd.xlane.f32.xlu0 %v871
        %v873 = vpop.xlane.xlu0 %872
        %v874 = vadd.f32 %v823, %v825
        %875 = vadd.xlane.f32.xlu0 %v874
        %v876 = vpop.xlane.xlu0 %875
        %v877 = vadd.f32 %v827, %v829
        %878 = vadd.xlane.f32.xlu0 %v877
        %v879 = vpop.xlane.xlu0 %878
        %v880 = vadd.f32 %v831, %v833
        %881 = vadd.xlane.f32.xlu0 %v880
        %v882 = vpop.xlane.xlu0 %881
        %v883 = vadd.f32 %v835, %v837
        %884 = vadd.xlane.f32.xlu0 %v883
        %v885 = vpop.xlane.xlu0 %884
        %v886 = vrcp.pop %v840
        %v887 = vrcp.pop %v843
        %v888 = vrcp.pop %v846
        %v889 = vrcp.pop %v849
        %v890 = vrcp.pop %v852
        %v891 = vrcp.pop %v855
        %v892 = vrcp.pop %v858
        %v893 = vrcp.pop %v861
        %v894 = vrcp.pop %v864
        %v895 = vrcp.pop %v867
        %v896 = vrcp.pop %v870
        %v897 = vrcp.pop %v873
        %v898 = vrcp.pop %v876
        %v899 = vrcp.pop %v879
        %v900 = vrcp.pop %v882
        %v901 = vrcp.pop %v885
        %v902 = vmul.f32 %v775, %v886
        %v903 = vmul.f32 %v777, %v886
        %v904 = vmul.f32 %v779, %v887
        %v905 = vmul.f32 %v781, %v887
        %v906 = vmul.f32 %v783, %v888
        %v907 = vmul.f32 %v785, %v888
        %v908 = vmul.f32 %v787, %v889
        %v909 = vmul.f32 %v789, %v889
        %v910 = vmul.f32 %v791, %v890
        %v911 = vmul.f32 %v793, %v890
        %v912 = vmul.f32 %v795, %v891
        %v913 = vmul.f32 %v797, %v891
        %v914 = vmul.f32 %v799, %v892
        %v915 = vmul.f32 %v801, %v892
        %v916 = vmul.f32 %v803, %v893
        %v917 = vmul.f32 %v805, %v893
        %v918 = vmul.f32 %v807, %v894
        %v919 = vmul.f32 %v809, %v894
        %v920 = vmul.f32 %v811, %v895
        %v921 = vmul.f32 %v813, %v895
        %v922 = vmul.f32 %v815, %v896
        %v923 = vmul.f32 %v817, %v896
        %v924 = vmul.f32 %v819, %v897
        %v925 = vmul.f32 %v821, %v897
        %v926 = vmul.f32 %v823, %v898
        %v927 = vmul.f32 %v825, %v898
        %v928 = vmul.f32 %v827, %v899
        %v929 = vmul.f32 %v829, %v899
        %v930 = vmul.f32 %v831, %v900
        %v931 = vmul.f32 %v833, %v900
        %v932 = vmul.f32 %v835, %v901
        %v933 = vmul.f32 %v837, %v901
        %934 = vst [vmem:[%s339] sm:$0xff] %v902
        %935 = vst [vmem:[%s339 + $0x8] sm:$0xff] %v903
        %936 = vst [vmem:[%s339 + $0x10] sm:$0xff] %v904
        %937 = vst [vmem:[%s339 + $0x18] sm:$0xff] %v905
        %938 = vst [vmem:[%s339 + $0x20] sm:$0xff] %v906
        %939 = vst [vmem:[%s339 + $0x28] sm:$0xff] %v907
        %940 = vst [vmem:[%s339 + $0x30] sm:$0xff] %v908
        %941 = vst [vmem:[%s339 + $0x38] sm:$0xff] %v909
        %942 = vst [vmem:[%s339 + $0x40] sm:$0xff] %v910
        %943 = vst [vmem:[%s339 + $0x48] sm:$0xff] %v911
        %944 = vst [vmem:[%s339 + $0x50] sm:$0xff] %v912
        %945 = vst [vmem:[%s339 + $0x58] sm:$0xff] %v913
        %946 = vst [vmem:[%s339 + $0x60] sm:$0xff] %v914
        %947 = vst [vmem:[%s339 + $0x68] sm:$0xff] %v915
        %948 = vst [vmem:[%s339 + $0x70] sm:$0xff] %v916
        %949 = vst [vmem:[%s339 + $0x78] sm:$0xff] %v917
        %950 = vst [vmem:[%s339 + $0x80] sm:$0xff] %v918
        %951 = vst [vmem:[%s339 + $0x88] sm:$0xff] %v919
        %952 = vst [vmem:[%s339 + $0x90] sm:$0xff] %v920
        %953 = vst [vmem:[%s339 + $0x98] sm:$0xff] %v921
        %954 = vst [vmem:[%s339 + $0xa0] sm:$0xff] %v922
        %955 = vst [vmem:[%s339 + $0xa8] sm:$0xff] %v923
        %956 = vst [vmem:[%s339 + $0xb0] sm:$0xff] %v924
        %957 = vst [vmem:[%s339 + $0xb8] sm:$0xff] %v925
        %958 = vst [vmem:[%s339 + $0xc0] sm:$0xff] %v926
        %959 = vst [vmem:[%s339 + $0xc8] sm:$0xff] %v927
        %960 = vst [vmem:[%s339 + $0xd0] sm:$0xff] %v928
        %961 = vst [vmem:[%s339 + $0xd8] sm:$0xff] %v929
        %962 = vst [vmem:[%s339 + $0xe0] sm:$0xff] %v930
        %963 = vst [vmem:[%s339 + $0xe8] sm:$0xff] %v931
        %964 = vst [vmem:[%s339 + $0xf0] sm:$0xff] %v932
        %965 = vst [vmem:[%s339 + $0xf8] sm:$0xff] %v933
        %v966 = vpack.c.bf16 %v904, %v902
        %v967 = vpack.c.bf16 %v905, %v903
        %v968 = vpack.c.bf16 %v908, %v906
        %v969 = vpack.c.bf16 %v909, %v907
        %v970 = vpack.c.bf16 %v912, %v910
        %v971 = vpack.c.bf16 %v913, %v911
        %v972 = vpack.c.bf16 %v916, %v914
        %v973 = vpack.c.bf16 %v917, %v915
        %v974 = vpack.c.bf16 %v920, %v918
        %v975 = vpack.c.bf16 %v921, %v919
        %v976 = vpack.c.bf16 %v924, %v922
        %v977 = vpack.c.bf16 %v925, %v923
        %v978 = vpack.c.bf16 %v928, %v926
        %v979 = vpack.c.bf16 %v929, %v927
        %v980 = vpack.c.bf16 %v932, %v930
        %v981 = vpack.c.bf16 %v933, %v931
        %v1014 = vunpack.c.l.b16 %v420
        %v1015 = vunpack.c.l.b16 %v421
        %v1016 = vunpack.c.l.b16 %v422
        %v1017 = vunpack.c.l.b16 %v423
        %v1018 = vunpack.c.l.b16 %v424
        %v1019 = vunpack.c.l.b16 %v425
        %v1020 = vunpack.c.l.b16 %v426
        %v1021 = vunpack.c.l.b16 %v427
        %v1022 = vunpack.c.l.b16 %v428
        %v1023 = vunpack.c.l.b16 %v429
        %v1024 = vunpack.c.l.b16 %v430
        %v1025 = vunpack.c.l.b16 %v431
        %v1026 = vunpack.c.l.b16 %v432
        %v1027 = vunpack.c.l.b16 %v433
        %v1028 = vunpack.c.l.b16 %v434
        %v1029 = vunpack.c.l.b16 %v435
        %v1030 = vunpack.c.l.b16 %v436
        %v1031 = vunpack.c.l.b16 %v437
        %v1032 = vunpack.c.l.b16 %v438
        %v1033 = vunpack.c.l.b16 %v439
        %v1034 = vunpack.c.l.b16 %v440
        %v1035 = vunpack.c.l.b16 %v441
        %v1036 = vunpack.c.l.b16 %v442
        %v1037 = vunpack.c.l.b16 %v443
        %v1038 = vunpack.c.l.b16 %v444
        %v1039 = vunpack.c.l.b16 %v445
        %v1040 = vunpack.c.l.b16 %v446
        %v1041 = vunpack.c.l.b16 %v447
        %v1042 = vunpack.c.l.b16 %v448
        %v1043 = vunpack.c.l.b16 %v449
        %v1044 = vunpack.c.l.b16 %v450
        %v1045 = vunpack.c.l.b16 %v451
        %v1046 = vpack.c.b16 %v1015, %v1014
        %v1047 = vpack.c.b16 %v1017, %v1016
        %v1048 = vpack.c.b16 %v1019, %v1018
        %v1049 = vpack.c.b16 %v1021, %v1020
        %v1050 = vpack.c.b16 %v1023, %v1022
        %v1051 = vpack.c.b16 %v1025, %v1024
        %v1052 = vpack.c.b16 %v1027, %v1026
        %v1053 = vpack.c.b16 %v1029, %v1028
        %v1054 = vpack.c.b16 %v1031, %v1030
        %v1055 = vpack.c.b16 %v1033, %v1032
        %v1056 = vpack.c.b16 %v1035, %v1034
        %v1057 = vpack.c.b16 %v1037, %v1036
        %v1058 = vpack.c.b16 %v1039, %v1038
        %v1059 = vpack.c.b16 %v1041, %v1040
        %v1060 = vpack.c.b16 %v1043, %v1042
        %v1061 = vpack.c.b16 %v1045, %v1044
        %1078 = vmatpush.bf16.msra.mxu0 %v1053
        %1079 = vmatpush.bf16.msra.mxu0 %v1052
        %1080 = vmatpush.bf16.msra.mxu0 %v1051
        %1081 = vmatpush.bf16.msra.mxu0 %v1050
        %1082 = vmatpush.bf16.msra.mxu0 %v1049
        %1083 = vmatpush.bf16.msra.mxu0 %v1048
        %1084 = vmatpush.bf16.msra.mxu0 %v1047
        %1085 = vmatpush.bf16.msra.mxu0 %v1046
        %1086 = vmatmul.bf16.gmra.mxu0 %v966
        %v1087 = vpop.f32.mrf.mxu0
        %v1088 = vadd.f32 0.0, %v1087
        %v1089 = vpop.f32.mrf.mxu0
        %v1090 = vadd.f32 0.0, %v1089
        %1091 = vmatmul.bf16.gmra.mxu0 %v968
        %v1092 = vpop.f32.mrf.mxu0
        %v1093 = vadd.f32 0.0, %v1092
        %v1094 = vpop.f32.mrf.mxu0
        %v1095 = vadd.f32 0.0, %v1094
        %1096 = vmatmul.bf16.gmra.mxu0 %v970
        %v1097 = vpop.f32.mrf.mxu0
        %v1098 = vadd.f32 0.0, %v1097
        %v1099 = vpop.f32.mrf.mxu0
        %v1100 = vadd.f32 0.0, %v1099
        %1101 = vmatmul.bf16.gmra.mxu0 %v972
        %v1102 = vpop.f32.mrf.mxu0
        %v1103 = vadd.f32 0.0, %v1102
        %v1104 = vpop.f32.mrf.mxu0
        %v1105 = vadd.f32 0.0, %v1104
        %1106 = vmatmul.bf16.gmra.mxu0 %v974
        %v1107 = vpop.f32.mrf.mxu0
        %v1108 = vadd.f32 0.0, %v1107
        %v1109 = vpop.f32.mrf.mxu0
        %v1110 = vadd.f32 0.0, %v1109
        %1111 = vmatmul.bf16.gmra.mxu0 %v976
        %v1112 = vpop.f32.mrf.mxu0
        %v1113 = vadd.f32 0.0, %v1112
        %v1114 = vpop.f32.mrf.mxu0
        %v1115 = vadd.f32 0.0, %v1114
        %1116 = vmatmul.bf16.gmra.mxu0 %v978
        %v1117 = vpop.f32.mrf.mxu0
        %v1118 = vadd.f32 0.0, %v1117
        %v1119 = vpop.f32.mrf.mxu0
        %v1120 = vadd.f32 0.0, %v1119
        %1121 = vmatmul.bf16.gmra.mxu0 %v980
        %v1122 = vpop.f32.mrf.mxu0
        %v1123 = vadd.f32 0.0, %v1122
        %v1124 = vpop.f32.mrf.mxu0
        %v1125 = vadd.f32 0.0, %v1124
        %1126 = vdwg.mxu0
        %1127 = vmatpush.bf16.msra.mxu0 %v1061
        %1128 = vmatpush.bf16.msra.mxu0 %v1060
        %1129 = vmatpush.bf16.msra.mxu0 %v1059
        %1130 = vmatpush.bf16.msra.mxu0 %v1058
        %1131 = vmatpush.bf16.msra.mxu0 %v1057
        %1132 = vmatpush.bf16.msra.mxu0 %v1056
        %1133 = vmatpush.bf16.msra.mxu0 %v1055
        %1134 = vmatpush.bf16.msra.mxu0 %v1054
        %1135 = vmatmul.bf16.gmra.mxu0 %v967
        %v1136 = vpop.f32.mrf.mxu0
        %v1137 = vadd.f32 %v1088, %v1136
        %v1138 = vpop.f32.mrf.mxu0
        %v1139 = vadd.f32 %v1090, %v1138
        %1140 = vmatmul.bf16.gmra.mxu0 %v969
        %v1141 = vpop.f32.mrf.mxu0
        %v1142 = vadd.f32 %v1093, %v1141
        %v1143 = vpop.f32.mrf.mxu0
        %v1144 = vadd.f32 %v1095, %v1143
        %1145 = vmatmul.bf16.gmra.mxu0 %v971
        %v1146 = vpop.f32.mrf.mxu0
        %v1147 = vadd.f32 %v1098, %v1146
        %v1148 = vpop.f32.mrf.mxu0
        %v1149 = vadd.f32 %v1100, %v1148
        %1150 = vmatmul.bf16.gmra.mxu0 %v973
        %v1151 = vpop.f32.mrf.mxu0
        %v1152 = vadd.f32 %v1103, %v1151
        %v1153 = vpop.f32.mrf.mxu0
        %v1154 = vadd.f32 %v1105, %v1153
        %1155 = vmatmul.bf16.gmra.mxu0 %v975
        %v1156 = vpop.f32.mrf.mxu0
        %v1157 = vadd.f32 %v1108, %v1156
        %v1158 = vpop.f32.mrf.mxu0
        %v1159 = vadd.f32 %v1110, %v1158
        %1160 = vmatmul.bf16.gmra.mxu0 %v977
        %v1161 = vpop.f32.mrf.mxu0
        %v1162 = vadd.f32 %v1113, %v1161
        %v1163 = vpop.f32.mrf.mxu0
        %v1164 = vadd.f32 %v1115, %v1163
        %1165 = vmatmul.bf16.gmra.mxu0 %v979
        %v1166 = vpop.f32.mrf.mxu0
        %v1167 = vadd.f32 %v1118, %v1166
        %v1168 = vpop.f32.mrf.mxu0
        %v1169 = vadd.f32 %v1120, %v1168
        %1170 = vmatmul.bf16.gmra.mxu0 %v981
        %v1171 = vpop.f32.mrf.mxu0
        %v1172 = vadd.f32 %v1123, %v1171
        %v1173 = vpop.f32.mrf.mxu0
        %v1174 = vadd.f32 %v1125, %v1173
        %1175 = vdwg.mxu0
        %s1176 = sld [smem:[#allocation2]]
        %v1177 = vstv %s1176
        %v1178 = vmul.f32 %v1177, %v1137
        %v1179 = vmul.f32 %v1177, %v1139
        %v1180 = vmul.f32 %v1177, %v1142
        %v1181 = vmul.f32 %v1177, %v1144
        %v1182 = vmul.f32 %v1177, %v1147
        %v1183 = vmul.f32 %v1177, %v1149
        %v1184 = vmul.f32 %v1177, %v1152
        %v1185 = vmul.f32 %v1177, %v1154
        %v1186 = vmul.f32 %v1177, %v1157
        %v1187 = vmul.f32 %v1177, %v1159
        %v1188 = vmul.f32 %v1177, %v1162
        %v1189 = vmul.f32 %v1177, %v1164
        %v1190 = vmul.f32 %v1177, %v1167
        %v1191 = vmul.f32 %v1177, %v1169
        %v1192 = vmul.f32 %v1177, %v1172
        %v1193 = vmul.f32 %v1177, %v1174
        %v1194 = vld [vmem:[%s368] sm:$0xff]
        %v1195 = vld [vmem:[%s368 + $0x8] sm:$0xff]
        %v1196 = vld [vmem:[%s368 + $0x10] sm:$0xff]
        %v1197 = vld [vmem:[%s368 + $0x18] sm:$0xff]
        %v1198 = vld [vmem:[%s368 + $0x20] sm:$0xff]
        %v1199 = vld [vmem:[%s368 + $0x28] sm:$0xff]
        %v1200 = vld [vmem:[%s368 + $0x30] sm:$0xff]
        %v1201 = vld [vmem:[%s368 + $0x38] sm:$0xff]
        %v1202 = vld [vmem:[%s368 + $0x40] sm:$0xff]
        %v1203 = vld [vmem:[%s368 + $0x48] sm:$0xff]
        %v1204 = vld [vmem:[%s368 + $0x50] sm:$0xff]
        %v1205 = vld [vmem:[%s368 + $0x58] sm:$0xff]
        %v1206 = vld [vmem:[%s368 + $0x60] sm:$0xff]
        %v1207 = vld [vmem:[%s368 + $0x68] sm:$0xff]
        %v1208 = vld [vmem:[%s368 + $0x70] sm:$0xff]
        %v1209 = vld [vmem:[%s368 + $0x78] sm:$0xff]
        %v1210 = vadd.f32 %v1178, %v1194
        %v1211 = vadd.f32 %v1179, %v1195
        %v1212 = vadd.f32 %v1180, %v1196
        %v1213 = vadd.f32 %v1181, %v1197
        %v1214 = vadd.f32 %v1182, %v1198
        %v1215 = vadd.f32 %v1183, %v1199
        %v1216 = vadd.f32 %v1184, %v1200
        %v1217 = vadd.f32 %v1185, %v1201
        %v1218 = vadd.f32 %v1186, %v1202
        %v1219 = vadd.f32 %v1187, %v1203
        %v1220 = vadd.f32 %v1188, %v1204
        %v1221 = vadd.f32 %v1189, %v1205
        %v1222 = vadd.f32 %v1190, %v1206
        %v1223 = vadd.f32 %v1191, %v1207
        %v1224 = vadd.f32 %v1192, %v1208
        %v1225 = vadd.f32 %v1193, %v1209
        %vm1226 = vcmask 523264
        %1227 = vst.msk [vmem:[%s332] sm:$0xff] %vm1226, %v1210
        %1228 = vst.msk [vmem:[%s332 + $0x8] sm:$0xff] %vm1226, %v1211
        %1229 = vst.msk [vmem:[%s332 + $0x10] sm:$0xff] %vm1226, %v1212
        %1230 = vst.msk [vmem:[%s332 + $0x18] sm:$0xff] %vm1226, %v1213
        %1231 = vst.msk [vmem:[%s332 + $0x20] sm:$0xff] %vm1226, %v1214
        %1232 = vst.msk [vmem:[%s332 + $0x28] sm:$0xff] %vm1226, %v1215
        %1233 = vst.msk [vmem:[%s332 + $0x30] sm:$0xff] %vm1226, %v1216
        %1234 = vst.msk [vmem:[%s332 + $0x38] sm:$0xff] %vm1226, %v1217
        %1235 = vst.msk [vmem:[%s332 + $0x40] sm:$0xff] %vm1226, %v1218
        %1236 = vst.msk [vmem:[%s332 + $0x48] sm:$0xff] %vm1226, %v1219
        %1237 = vst.msk [vmem:[%s332 + $0x50] sm:$0xff] %vm1226, %v1220
        %1238 = vst.msk [vmem:[%s332 + $0x58] sm:$0xff] %vm1226, %v1221
        %1239 = vst.msk [vmem:[%s332 + $0x60] sm:$0xff] %vm1226, %v1222
        %1240 = vst.msk [vmem:[%s332 + $0x68] sm:$0xff] %vm1226, %v1223
        %1241 = vst.msk [vmem:[%s332 + $0x70] sm:$0xff] %vm1226, %v1224
        %1242 = vst.msk [vmem:[%s332 + $0x78] sm:$0xff] %vm1226, %v1225
        %s1243 = sand.u32 %s176, 1
        %s1244 = scalar_lea.sflag [#allocation4], %s1243
        %s1245 = sand.u32 %s176, 1
        %s1246 = smul.addr %s1245, 128
        %s1247 = scalar_lea.vmem [#allocation3], %s1246
        %s1248 = sand.u32 %s204, 1
        %s1249 = scalar_lea.sflag [#allocation6], %s1248
        %s1250 = sand.u32 %s204, 1
        %s1251 = smul.addr %s1250, 256
        %s1252 = scalar_lea.vmem [#allocation5], %s1251
        // Predicated region
        $region41: #{self_attn.3} parent=39 // pred_check
          %p1253 = pneg %p186
        $region42: #{self_attn.3} parent=39 // pred_check_branch
          %1255 = sbr.rel (%p1253) target = $region44
        $region43: #{self_attn.3} parent=39 // pred_region
          %s1256 = smul.u32 16, %s30
          %1258 = vsyncadd %s1244, 0
          %s1259 = smul.addr %s29, 32
          %s1260 = sadd.s32 %s1256, %s1259
          %s1261 = smul.addr %s1260, 8
          %s1262 = scalar_lea.hbm %s5, %s1261
          %s1263 = sshll.u32 %s1247, 4
          %s1264 = int_to_ptr.vmem [resolvable:$true] %s1263
          %s1265 = sshll.u32 %s1262, 4
          %s1266 = int_to_ptr.hbm [resolvable:$true] %s1265
          %1271 = dma.vmem_to_hbm [thread:$0]  %s1264, 2048, %s1266, %s1244, 128, 128, 8
        $region44: #{self_attn.3} parent=39 // pred_fallthru
          _
        // Predicated region
        $region45: #{self_attn.3} parent=39 // pred_check
          %p1272 = pneg %p214
        $region46: #{self_attn.3} parent=39 // pred_check_branch
          %1274 = sbr.rel (%p1272) target = $region48
        $region47: #{self_attn.3} parent=39 // pred_region
          %s1275 = smul.u32 16, %s30
          %1277 = vsyncadd %s1249, 0
          %s1278 = smul.addr %s1275, 2
          %s1279 = smul.addr %s29, 64
          %s1280 = sadd.s32 %s1278, %s1279
          %s1281 = smul.addr %s1280, 8
          %s1282 = scalar_lea.hbm %s6, %s1281
          %s1283 = sshll.u32 %s1252, 4
          %s1284 = int_to_ptr.vmem [resolvable:$true] %s1283
          %s1285 = sshll.u32 %s1282, 4
          %s1286 = int_to_ptr.hbm [resolvable:$true] %s1285
          %1291 = dma.vmem_to_hbm [thread:$0]  %s1284, 4096, %s1286, %s1249, 256, 256, 16
        $region48: #{self_attn.3} parent=39 // pred_fallthru
          _
      $region40: #{self_attn.3} parent=5 // pred_fallthru
        _
      %p1292 = scmp.le.s32.totalorder 2, %s20
      // Predicated region
      $region49: #{self_attn.3} parent=5 // pred_check
        %p1293 = pneg %p1292
      $region50: #{self_attn.3} parent=5 // pred_check_branch
        %1295 = sbr.rel (%p1293) target = $region52
      $region51: #{self_attn.3} parent=5 // pred_region
        %s1296 = ssub.s32 %s20, 2
        // Predicated region
        $region53: #{self_attn.3} parent=51 // pred_check
          %p1297 = pneg %p192
        $region54: #{self_attn.3} parent=51 // pred_check_branch
          %1299 = sbr.rel (%p1297) target = $region56
        $region55: #{self_attn.3} parent=51 // pred_region
          %s1300 = sand.u32 %s177, 1
          %s1301 = scalar_lea.sflag [#allocation4], %s1300
          %s1302 = sand.u32 %s177, 1
          %s1303 = smul.addr %s1302, 128
          %s1304 = scalar_lea.vmem [#allocation3], %s1303
          %1306 = dma.done %s1301, 2048
        $region56: #{self_attn.3} parent=51 // pred_fallthru
          _
        // Predicated region
        $region57: #{self_attn.3} parent=51 // pred_check
          %p1307 = pneg %p220
        $region58: #{self_attn.3} parent=51 // pred_check_branch
          %1309 = sbr.rel (%p1307) target = $region60
        $region59: #{self_attn.3} parent=51 // pred_region
          %s1310 = sand.u32 %s205, 1
          %s1311 = scalar_lea.sflag [#allocation6], %s1310
          %s1312 = sand.u32 %s205, 1
          %s1313 = smul.addr %s1312, 256
          %s1314 = scalar_lea.vmem [#allocation5], %s1313
          %1316 = dma.done %s1311, 4096
        $region60: #{self_attn.3} parent=51 // pred_fallthru
          _
      $region52: #{self_attn.3} parent=5 // pred_fallthru
        _
    $region6: #{self_attn.3} parent=1 // loop_footer
      %s24 = sadd.s32 1, %s20
    $region7: #{self_attn.3} parent=1 // loop_footer_branch
      %19 = sbr.rel target = $region3
    $region8: #{self_attn.3} parent=1 // loop_exit
      _
    %1317 = vsyncpa [#allocation4], 1
    %s1318 = scalar_lea.sflag [#allocation4], 1
    %1319 = vsyncpa %s1318, 1
    %1320 = vsyncpa [#allocation6], 1
    %s1321 = scalar_lea.sflag [#allocation6], 1
    %1322 = vsyncpa %s1321, 1

</llo_original>
